<compile_context>
chip_gen: v6e
topology: v6e:2x2x1
jax: 0.10.0
libtpu: 0.0.40
codegen_flags: <defaults>
</compile_context>

<pallas_src>
import functools

import jax
import jax.numpy as jnp
import numpy as np
from jax import lax
from jax.experimental import pallas as pl
from jax.experimental.pallas import tpu as pltpu
from jax.scipy.special import gammaln


# ----- log-gamma (Lanczos, g=7, n=9), valid for z > 0.5 ----------------------
_LANCZOS_G = 7.0
_LANCZOS_COEF = (
    0.99999999999980993,
    676.5203681218851,
    -1259.1392167224028,
    771.32342877765313,
    -176.61502916214059,
    12.507343278686905,
    -0.13857109526572012,
    9.9843695780195716e-6,
    1.5056327351493116e-7,
)


def _lgamma(z):
    """Lanczos log-gamma, pure jnp (used both in-kernel and in the wrapper)."""
    x = jnp.full_like(z, _LANCZOS_COEF[0])
    for i in range(1, 9):
        x = x + _LANCZOS_COEF[i] / (z - 1.0 + float(i))
    t = z + _LANCZOS_G - 0.5
    return 0.5 * jnp.log(2.0 * jnp.pi) + (z - 0.5) * jnp.log(t) - t + jnp.log(x)


# ----- fused kernel: per-voxel NB log-likelihood terms -----------------------
def _glmnb_kernel(scal_ref, beta_ref, x_ref, y_ref, out_ref):
    # scal_ref (SMEM): [log(s2 / (v*s1)), r, lgamma(r)]
    log_s2_over_a = scal_ref[0]
    r = scal_ref[1]
    lgr = scal_ref[2]

    # log_mu for this voxel tile as a lane-dense row via the MXU (NT matmul).
    # beta_ref is beta replicated over 8 sublanes, so all rows of lm8 are equal.
    lm8 = lax.dot_general(
        beta_ref[...], x_ref[...],
        dimension_numbers=(((1,), (1,)), ((), ())),
        preferred_element_type=jnp.float32,
    )                                    # (8, TV)
    log_mu = lm8[0:1, :]                 # (1, TV)

    y = y_ref[...]                       # (1, TV)

    # d = logit(p) = log_mu + log(s2) - log(v*s1)
    d = log_mu + log_s2_over_a
    # shared softplus remainder: softplus(x) = max(x, 0) + log(1 + exp(-|x|))
    c = jnp.log(1.0 + jnp.exp(-jnp.abs(d)))
    # r*log(1-p) + y*log(p) = -r*softplus(d) - y*softplus(-d)
    nb = -(r * (jnp.maximum(d, 0.0) + c) + y * (jnp.maximum(-d, 0.0) + c))

    # first_three_term: lgamma(y+r) - lgamma(y+1) - lgamma(r) for y >= 1.
    # (the data-only lgamma(y+1) piece is folded into a wrapper constant)
    ftt = jnp.where(y >= 1.0, _lgamma(y + r) - lgr, 0.0)

    out_ref[...] = ftt + nb


# ----- wrapper ---------------------------------------------------------------
def _pick_tile(n_voxel):
    for tv in (2048, 1024, 512, 256, 128):
        if n_voxel % tv == 0:
            return tv
    raise ValueError("n_voxel must be a multiple of 128")


def glmnb_forward(X, y, beta_w, theta, Z, gamma_w, *, n_study):
    n_voxel, beta_dim = X.shape
    tv = _pick_tile(n_voxel)
    grid = (n_voxel // tv,)

    X = X.astype(jnp.float32)
    y_row = y.astype(jnp.float32).reshape(1, n_voxel)
    # beta replicated across 8 sublanes so the MXU matmul has tile-aligned M.
    beta_rep = jnp.broadcast_to(
        beta_w.reshape(1, beta_dim).astype(jnp.float32), (8, beta_dim))

    # ---- small per-study / scalar quantities (plain JAX glue) ----
    if gamma_w is not None:
        mu_Z = jnp.exp(Z.astype(jnp.float32)
                       @ gamma_w.reshape(-1, 1).astype(jnp.float32))
    else:
        mu_Z = jnp.ones((n_study, 1), jnp.float32)
    s1 = jnp.sum(mu_Z)
    s2 = jnp.sum(mu_Z ** 2)
    alpha = 100.0 * n_study * jax.nn.sigmoid(theta.astype(jnp.float32))[0] + 1e-8

    # estimated_alpha = mean(alpha * mu^2*s2 / (mu^2*s1^2)) = alpha*s2/s1^2
    # (mu^2 cancels exactly), so v, r, lgamma(r) are closed-form scalars.
    v = s1 * s1 / (alpha * s2)
    a = v * s1                       # = v * sum(mu_Z)
    r = v * s1 * s1 / s2
    lgr = _lgamma(r)
    scal = jnp.stack([jnp.log(s2) - jnp.log(a), r, lgr]).astype(jnp.float32)

    terms = pl.pallas_call(
        _glmnb_kernel,
        out_shape=jax.ShapeDtypeStruct((1, n_voxel), jnp.float32),
        grid=grid,
        in_specs=[
            pl.BlockSpec(memory_space=pltpu.MemorySpace.SMEM),   # scalars
            pl.BlockSpec((8, beta_dim), lambda i: (0, 0)),       # beta (repl.)
            pl.BlockSpec((tv, beta_dim), lambda i: (i, 0)),      # X tile
            pl.BlockSpec((1, tv), lambda i: (0, i)),             # y tile
        ],
        out_specs=pl.BlockSpec((1, tv), lambda i: (0, i)),
        compiler_params=pltpu.CompilerParams(
            dimension_semantics=("parallel",)),
    )(scal, beta_rep, X, y_row)

    # data-only part of first_three_term: -sum_{y>=1} lgamma(y+1)
    yf = y_row[0]
    c1 = jnp.sum(jnp.where(yf >= 1.0, gammaln(yf + 1.0), 0.0))

    l = jnp.sum(terms) - c1
    return -l


# ----- pure-JAX reference (sanity check) -------------------------------------
def _ref_forward(X, y, beta_w, theta, Z, gamma_w, n_study):
    log_mu_X = X @ beta_w.T
    mu_X = jnp.exp(log_mu_X)
    mu_Z = jnp.exp(Z @ gamma_w.T) if gamma_w is not None else jnp.ones((n_study, 1))
    alpha = 100.0 * n_study * jax.nn.sigmoid(theta)[0] + 1e-8
    numerator = mu_X ** 2 * jnp.sum(mu_Z ** 2)
    denominator = mu_X ** 2 * jnp.sum(mu_Z) ** 2
    est_alpha = jnp.mean(alpha * numerator / denominator)
    v = 1.0 / est_alpha
    sum_mu_ij = mu_X * jnp.sum(mu_Z)
    p = numerator / (v * sum_mu_ij + numerator)
    r = v * denominator / numerator
    ftt = jnp.sum(jnp.where(y >= 1.0,
                            gammaln(y + r) - gammaln(y + 1.0) - gammaln(r), 0.0))
    l = ftt + jnp.sum(r * jnp.log(1.0 - p) + y * jnp.log(p))
    return -l


if __name__ == "__main__":
    n_voxel, beta_dim, n_study, gamma_dim = 8192, 32, 8, 4

    key = jax.random.PRNGKey(0)
    k1, k2, k3, k4, k5 = jax.random.split(key, 5)

    # inputs
    X = 0.1 * jax.random.normal(k1, (n_voxel, beta_dim), jnp.float32)
    y = jax.random.randint(k2, (n_voxel, 1), 0, 4).astype(jnp.float32)
    Z = 0.1 * jax.random.normal(k3, (n_study, gamma_dim), jnp.float32)

    # parameters (deterministic init mirroring the module's __init__)
    beta_w = jax.random.uniform(k4, (1, beta_dim), jnp.float32, -0.01, 0.01)
    gamma_w = jax.random.uniform(k5, (1, gamma_dim), jnp.float32, -0.1, 0.1)
    alpha_init = 0.1
    theta = jnp.array([-np.log(100.0 * n_study / alpha_init - 1.0)], jnp.float32)

    fwd = jax.jit(functools.partial(glmnb_forward, n_study=n_study))
    neg_ll = jax.block_until_ready(fwd(X, y, beta_w, theta, Z, gamma_w))

    ref = _ref_forward(X, y, beta_w, theta, Z, gamma_w, n_study)
    np.testing.assert_allclose(np.asarray(neg_ll), np.asarray(ref),
                               rtol=5e-3, atol=0.5)

    print("KERNEL_OK")
</pallas_src>

<mosaic_0001>
module attributes {stable_mosaic.version = 11 : i64} {
  func.func @_glmnb_kernel(%arg0: i32, %arg1: memref<3xf32, #tpu.memory_space<smem>>, %arg2: memref<8x32xf32, #tpu.memory_space<vmem>>, %arg3: memref<2048x32xf32, #tpu.memory_space<vmem>>, %arg4: memref<1x2048xf32, #tpu.memory_space<vmem>>, %arg5: memref<1x2048xf32, #tpu.memory_space<vmem>>) attributes {dimension_semantics = [#tpu.dimension_semantics<parallel>], iteration_bounds = array<i64: 4>, scalar_prefetch = 0 : i64, scratch_operands = 0 : i64, tpu.core_type = #tpu.core_type<tc>, window_params = [{transform_indices = @transform_0, window_bounds = array<i64: 3>}, {pipeline_mode = #tpu.pipeline_mode<synchronous>, transform_indices = @transform_1, window_bounds = array<i64: 8, 32>}, {transform_indices = @transform_2, window_bounds = array<i64: 2048, 32>}, {transform_indices = @transform_3, window_bounds = array<i64: 1, 2048>}, {transform_indices = @transform_4, window_bounds = array<i64: 1, 2048>}]} {
    %c0 = arith.constant 0 : index
    %0 = memref.load %arg1[%c0] : memref<3xf32, #tpu.memory_space<smem>>
    %c1 = arith.constant 1 : index
    %1 = memref.load %arg1[%c1] : memref<3xf32, #tpu.memory_space<smem>>
    %c2 = arith.constant 2 : index
    %2 = memref.load %arg1[%c2] : memref<3xf32, #tpu.memory_space<smem>>
    %c0_0 = arith.constant 0 : index
    %c0_1 = arith.constant 0 : index
    %3 = vector.load %arg2[%c0_0, %c0_1] : memref<8x32xf32, #tpu.memory_space<vmem>>, vector<8x32xf32>
    %c0_2 = arith.constant 0 : index
    %c0_3 = arith.constant 0 : index
    %4 = vector.load %arg3[%c0_2, %c0_3] : memref<2048x32xf32, #tpu.memory_space<vmem>>, vector<2048x32xf32>
    %cst = arith.constant dense<0.000000e+00> : vector<8x2048xf32>
    %5 = tpu.matmul %3, %4, %cst {dimension_numbers = #tpu.dot_dimension_numbers<[1], [1], [0], [0], [0, 0, 1, 0], [], []>} : vector<8x32xf32>, vector<2048x32xf32>, vector<8x2048xf32> -> vector<8x2048xf32>
    %6 = vector.extract_strided_slice %5 {offsets = [0, 0], sizes = [1, 2048], strides = [1, 1]} : vector<8x2048xf32> to vector<1x2048xf32>
    %c0_4 = arith.constant 0 : index
    %c0_5 = arith.constant 0 : index
    %7 = vector.load %arg4[%c0_4, %c0_5] : memref<1x2048xf32, #tpu.memory_space<vmem>>, vector<1x2048xf32>
    %8 = vector.broadcast %0 : f32 to vector<1x2048xf32>
    %9 = arith.addf %6, %8 : vector<1x2048xf32>
    %10 = math.absf %9 : vector<1x2048xf32>
    %cst_6 = arith.constant 0.000000e+00 : f32
    %11 = vector.broadcast %cst_6 : f32 to vector<1x2048xf32>
    %12 = arith.subf %11, %10 : vector<1x2048xf32>
    %13 = math.exp %12 : vector<1x2048xf32>
    %cst_7 = arith.constant 1.000000e+00 : f32
    %14 = vector.broadcast %cst_7 : f32 to vector<1x2048xf32>
    %15 = arith.addf %14, %13 : vector<1x2048xf32>
    %16 = math.log %15 : vector<1x2048xf32>
    %cst_8 = arith.constant 0.000000e+00 : f32
    %17 = vector.broadcast %cst_8 : f32 to vector<1x2048xf32>
    %18 = arith.maximumf %9, %17 : vector<1x2048xf32>
    %19 = arith.addf %18, %16 : vector<1x2048xf32>
    %20 = vector.broadcast %1 : f32 to vector<1x2048xf32>
    %21 = arith.mulf %20, %19 : vector<1x2048xf32>
    %cst_9 = arith.constant 0.000000e+00 : f32
    %22 = vector.broadcast %cst_9 : f32 to vector<1x2048xf32>
    %23 = arith.subf %22, %9 : vector<1x2048xf32>
    %cst_10 = arith.constant 0.000000e+00 : f32
    %24 = vector.broadcast %cst_10 : f32 to vector<1x2048xf32>
    %25 = arith.maximumf %23, %24 : vector<1x2048xf32>
    %26 = arith.addf %25, %16 : vector<1x2048xf32>
    %27 = arith.mulf %7, %26 : vector<1x2048xf32>
    %28 = arith.addf %21, %27 : vector<1x2048xf32>
    %cst_11 = arith.constant 0.000000e+00 : f32
    %29 = vector.broadcast %cst_11 : f32 to vector<1x2048xf32>
    %30 = arith.subf %29, %28 : vector<1x2048xf32>
    %cst_12 = arith.constant 1.000000e+00 : f32
    %31 = vector.broadcast %cst_12 : f32 to vector<1x2048xf32>
    %32 = arith.cmpf oge, %7, %31 : vector<1x2048xf32>
    %33 = vector.broadcast %1 : f32 to vector<1x2048xf32>
    %34 = arith.addf %7, %33 : vector<1x2048xf32>
    %cst_13 = arith.constant 1.000000e+00 : f32
    %35 = vector.broadcast %cst_13 : f32 to vector<1x2048xf32>
    %cst_14 = arith.constant 1.000000e+00 : f32
    %36 = vector.broadcast %cst_14 : f32 to vector<1x2048xf32>
    %37 = arith.subf %34, %36 : vector<1x2048xf32>
    %cst_15 = arith.constant 1.000000e+00 : f32
    %38 = vector.broadcast %cst_15 : f32 to vector<1x2048xf32>
    %39 = arith.addf %37, %38 : vector<1x2048xf32>
    %cst_16 = arith.constant 676.520386 : f32
    %40 = vector.broadcast %cst_16 : f32 to vector<1x2048xf32>
    %41 = arith.divf %40, %39 : vector<1x2048xf32>
    %42 = arith.addf %35, %41 : vector<1x2048xf32>
    %cst_17 = arith.constant 1.000000e+00 : f32
    %43 = vector.broadcast %cst_17 : f32 to vector<1x2048xf32>
    %44 = arith.subf %34, %43 : vector<1x2048xf32>
    %cst_18 = arith.constant 2.000000e+00 : f32
    %45 = vector.broadcast %cst_18 : f32 to vector<1x2048xf32>
    %46 = arith.addf %44, %45 : vector<1x2048xf32>
    %cst_19 = arith.constant -1259.13916 : f32
    %47 = vector.broadcast %cst_19 : f32 to vector<1x2048xf32>
    %48 = arith.divf %47, %46 : vector<1x2048xf32>
    %49 = arith.addf %42, %48 : vector<1x2048xf32>
    %cst_20 = arith.constant 1.000000e+00 : f32
    %50 = vector.broadcast %cst_20 : f32 to vector<1x2048xf32>
    %51 = arith.subf %34, %50 : vector<1x2048xf32>
    %cst_21 = arith.constant 3.000000e+00 : f32
    %52 = vector.broadcast %cst_21 : f32 to vector<1x2048xf32>
    %53 = arith.addf %51, %52 : vector<1x2048xf32>
    %cst_22 = arith.constant 771.323425 : f32
    %54 = vector.broadcast %cst_22 : f32 to vector<1x2048xf32>
    %55 = arith.divf %54, %53 : vector<1x2048xf32>
    %56 = arith.addf %49, %55 : vector<1x2048xf32>
    %cst_23 = arith.constant 1.000000e+00 : f32
    %57 = vector.broadcast %cst_23 : f32 to vector<1x2048xf32>
    %58 = arith.subf %34, %57 : vector<1x2048xf32>
    %cst_24 = arith.constant 4.000000e+00 : f32
    %59 = vector.broadcast %cst_24 : f32 to vector<1x2048xf32>
    %60 = arith.addf %58, %59 : vector<1x2048xf32>
    %cst_25 = arith.constant -176.615036 : f32
    %61 = vector.broadcast %cst_25 : f32 to vector<1x2048xf32>
    %62 = arith.divf %61, %60 : vector<1x2048xf32>
    %63 = arith.addf %56, %62 : vector<1x2048xf32>
    %cst_26 = arith.constant 1.000000e+00 : f32
    %64 = vector.broadcast %cst_26 : f32 to vector<1x2048xf32>
    %65 = arith.subf %34, %64 : vector<1x2048xf32>
    %cst_27 = arith.constant 5.000000e+00 : f32
    %66 = vector.broadcast %cst_27 : f32 to vector<1x2048xf32>
    %67 = arith.addf %65, %66 : vector<1x2048xf32>
    %cst_28 = arith.constant 12.5073433 : f32
    %68 = vector.broadcast %cst_28 : f32 to vector<1x2048xf32>
    %69 = arith.divf %68, %67 : vector<1x2048xf32>
    %70 = arith.addf %63, %69 : vector<1x2048xf32>
    %cst_29 = arith.constant 1.000000e+00 : f32
    %71 = vector.broadcast %cst_29 : f32 to vector<1x2048xf32>
    %72 = arith.subf %34, %71 : vector<1x2048xf32>
    %cst_30 = arith.constant 6.000000e+00 : f32
    %73 = vector.broadcast %cst_30 : f32 to vector<1x2048xf32>
    %74 = arith.addf %72, %73 : vector<1x2048xf32>
    %cst_31 = arith.constant -0.138571098 : f32
    %75 = vector.broadcast %cst_31 : f32 to vector<1x2048xf32>
    %76 = arith.divf %75, %74 : vector<1x2048xf32>
    %77 = arith.addf %70, %76 : vector<1x2048xf32>
    %cst_32 = arith.constant 1.000000e+00 : f32
    %78 = vector.broadcast %cst_32 : f32 to vector<1x2048xf32>
    %79 = arith.subf %34, %78 : vector<1x2048xf32>
    %cst_33 = arith.constant 7.000000e+00 : f32
    %80 = vector.broadcast %cst_33 : f32 to vector<1x2048xf32>
    %81 = arith.addf %79, %80 : vector<1x2048xf32>
    %cst_34 = arith.constant 9.98436917E-6 : f32
    %82 = vector.broadcast %cst_34 : f32 to vector<1x2048xf32>
    %83 = arith.divf %82, %81 : vector<1x2048xf32>
    %84 = arith.addf %77, %83 : vector<1x2048xf32>
    %cst_35 = arith.constant 1.000000e+00 : f32
    %85 = vector.broadcast %cst_35 : f32 to vector<1x2048xf32>
    %86 = arith.subf %34, %85 : vector<1x2048xf32>
    %cst_36 = arith.constant 8.000000e+00 : f32
    %87 = vector.broadcast %cst_36 : f32 to vector<1x2048xf32>
    %88 = arith.addf %86, %87 : vector<1x2048xf32>
    %cst_37 = arith.constant 1.50563267E-7 : f32
    %89 = vector.broadcast %cst_37 : f32 to vector<1x2048xf32>
    %90 = arith.divf %89, %88 : vector<1x2048xf32>
    %91 = arith.addf %84, %90 : vector<1x2048xf32>
    %cst_38 = arith.constant 7.000000e+00 : f32
    %92 = vector.broadcast %cst_38 : f32 to vector<1x2048xf32>
    %93 = arith.addf %34, %92 : vector<1x2048xf32>
    %cst_39 = arith.constant 5.000000e-01 : f32
    %94 = vector.broadcast %cst_39 : f32 to vector<1x2048xf32>
    %95 = arith.subf %93, %94 : vector<1x2048xf32>
    %cst_40 = arith.constant 6.28318548 : f32
    %96 = math.log %cst_40 : f32
    %cst_41 = arith.constant 5.000000e-01 : f32
    %97 = arith.mulf %cst_41, %96 : f32
    %cst_42 = arith.constant 5.000000e-01 : f32
    %98 = vector.broadcast %cst_42 : f32 to vector<1x2048xf32>
    %99 = arith.subf %34, %98 : vector<1x2048xf32>
    %100 = math.log %95 : vector<1x2048xf32>
    %101 = arith.mulf %99, %100 : vector<1x2048xf32>
    %102 = vector.broadcast %97 : f32 to vector<1x2048xf32>
    %103 = arith.addf %102, %101 : vector<1x2048xf32>
    %104 = arith.subf %103, %95 : vector<1x2048xf32>
    %105 = math.log %91 : vector<1x2048xf32>
    %106 = arith.addf %104, %105 : vector<1x2048xf32>
    %107 = vector.broadcast %2 : f32 to vector<1x2048xf32>
    %108 = arith.subf %106, %107 : vector<1x2048xf32>
    %cst_43 = arith.constant 0.000000e+00 : f32
    %109 = vector.broadcast %cst_43 : f32 to vector<1x2048xf32>
    %110 = arith.select %32, %108, %109 : vector<1x2048xi1>, vector<1x2048xf32>
    %111 = arith.addf %110, %30 : vector<1x2048xf32>
    %c0_44 = arith.constant 0 : index
    %c0_45 = arith.constant 0 : index
    %112 = vector.load %arg5[%c0_44, %c0_45] : memref<1x2048xf32, #tpu.memory_space<vmem>>, vector<1x2048xf32>
    tpu.vector_store %arg5[%c0_44, %c0_45], %111 {strides = array<i32>} : memref<1x2048xf32, #tpu.memory_space<vmem>>, vector<1x2048xf32>,
    return
  }
  func.func @transform_0(%arg0: i32) -> i32 {
    %c0_i32 = arith.constant 0 : i32
    %c0_i32_0 = arith.constant 0 : i32
    return %c0_i32 : i32
  }
  func.func @transform_1(%arg0: i32) -> (i32, i32) {
    %c0_i32 = arith.constant 0 : i32
    %c0_i32_0 = arith.constant 0 : i32
    %c0_i32_1 = arith.constant 0 : i32
    return %c0_i32, %c0_i32_0 : i32, i32
  }
  func.func @transform_2(%arg0: i32) -> (i32, i32) {
    %c0_i32 = arith.constant 0 : i32
    %c0_i32_0 = arith.constant 0 : i32
    return %arg0, %c0_i32 : i32, i32
  }
  func.func @transform_3(%arg0: i32) -> (i32, i32) {
    %c0_i32 = arith.constant 0 : i32
    %c0_i32_0 = arith.constant 0 : i32
    return %c0_i32, %arg0 : i32, i32
  }
  func.func @transform_4(%arg0: i32) -> (i32, i32) {
    %c0_i32 = arith.constant 0 : i32
    %c0_i32_0 = arith.constant 0 : i32
    return %c0_i32, %arg0 : i32, i32
  }
}

</mosaic_0001>

<llo_original>
// kernel: glmnb_forward.1
$region0: #{glmnb_forward.1}
  #allocation0 [shape = 'u32[]', space=smem, size = 0x4, offset = 0x4, fixed_abs, tag = 'smem constant byte address 0x4 - core index']
  #allocation1 [shape = 'u32[144,128]{1,0:T(1,128)}', space=vmem, size = 0x12000, scoped, tag = 'internal scratch']
  %s0 = inlined_call_operand.vmem [shape: f32[3], index: 0, kind: input, shape index: {}]
  %s1 = inlined_call_operand.vmem [shape: f32[8,32], index: 1, kind: input, shape index: {}]
  %s2 = inlined_call_operand.vmem [shape: f32[8192,32], index: 2, kind: input, shape index: {}]
  %s3 = inlined_call_operand.vmem [shape: f32[1,8192], index: 3, kind: input, shape index: {}]
  %s4 = inlined_call_operand.vmem [shape: f32[1,8192], index: 4, kind: output, shape index: {}]
  %s5 = sld [smem:[#allocation0]]
  $region53: #{glmnb_forward.1} parent=0
    _
  %s7 = ssub.s32 1, %s5
  %s8 = scalar_select 0, %s7, %s5
  $region1: #{glmnb_forward.1} parent=0
    #allocation2 [shape = 'u8[512]{0}', space=smem, size = 0x200, scoped, tag = 'input window, operand 0, single buffered']
    #allocation3 [shape = 's32[2]{0}', space=sflag, size = 0x8, scoped, tag = 'scoped memory for glmnb_forward.1']
    %9 = vsyncpa [#allocation3], 0
    loop: start=0, step=1, limit=6
    $region2: #{glmnb_forward.1} parent=1 // loop_pre_header
      _
    $region3: #{glmnb_forward.1} parent=1 // loop_header
      %s11 = sphi 0, %s15
      %p12 = scmp.ge.s32.totalorder %s11, 6
      %s19 = sphi 0, %s19
      %s21 = sphi 0, %s19
      %s22 = sphi 0, %s21
      %s36 = sphi 0, %s22
      %s40 = sphi 0, %s40
      %s42 = sphi 0, %s40
      %s43 = sphi 0, %s42
      %s57 = sphi 0, %s43
      %s63 = sphi 0, %s65
      %s66 = sphi 0, %s63
      %s67 = sphi 0, %s66
      %s83 = sphi 0, %s67
      %s89 = sphi 0, %s91
      %s92 = sphi 0, %s89
      %s93 = sphi 0, %s92
      %s109 = sphi 0, %s93
      %s115 = sphi 0, %s117
      %s118 = sphi 0, %s115
      %s119 = sphi 0, %s118
      %s135 = sphi 0, %s119
    $region4: #{glmnb_forward.1} parent=1 // loop_header_branch
      %14 = sbr.rel (%p12) target = $region8
    $region5: #{glmnb_forward.1} parent=1 // loop_body
      %s16 = ssub.s32 %s11, 1
      %s17 = ssub.s32 %s11, 2
      %s18 = sadd.s32 %s11, 1
      %s20 = sadd.s32 %s19, 1
      %p23 = scmp.eq.s32.totalorder %s11, 3
      %p24 = scmp.ne.s32.totalorder %s19, %s21
      %p25 = scmp.eq.s32.totalorder %s11, 0
      %p26 = por %p24, %p25
      %p27 = scmp.ne.s32.totalorder %s19, %s21
      %p28 = scmp.eq.s32.totalorder %s16, 3
      %p29 = por %p27, %p28
      %p30 = scmp.ne.s32.totalorder %s21, %s22
      %p31 = scmp.eq.s32.totalorder %s16, 0
      %p32 = por %p30, %p31
      %p33 = scmp.ne.s32.totalorder %s21, %s22
      %p34 = scmp.eq.s32.totalorder %s17, 3
      %p35 = por %p33, %p34
      %p37 = scmp.ne.s32.totalorder %s22, %s36
      %p38 = scmp.eq.s32.totalorder %s17, 0
      %p39 = por %p37, %p38
      %s41 = sadd.s32 %s40, 1
      %p44 = scmp.eq.s32.totalorder %s11, 3
      %p45 = scmp.ne.s32.totalorder %s40, %s42
      %p46 = scmp.eq.s32.totalorder %s11, 0
      %p47 = por %p45, %p46
      %p48 = scmp.ne.s32.totalorder %s40, %s42
      %p49 = scmp.eq.s32.totalorder %s16, 3
      %p50 = por %p48, %p49
      %p51 = scmp.ne.s32.totalorder %s42, %s43
      %p52 = scmp.eq.s32.totalorder %s16, 0
      %p53 = por %p51, %p52
      %p54 = scmp.ne.s32.totalorder %s42, %s43
      %p55 = scmp.eq.s32.totalorder %s17, 3
      %p56 = por %p54, %p55
      %p58 = scmp.ne.s32.totalorder %s43, %s57
      %p59 = scmp.eq.s32.totalorder %s17, 0
      %p60 = por %p58, %p59
      %s61 = ssub.s32 %s11, %s18
      %p62 = scmp.eq.s32.totalorder %s61, 0
      %s64 = sadd.s32 %s63, 1
      %s65 = scalar_select %p62, %s63, %s64
      %p68 = pneg %p62
      %p69 = scmp.eq.s32.totalorder %s11, 3
      %p70 = por %p68, %p69
      %p71 = scmp.ne.s32.totalorder %s63, %s66
      %p72 = scmp.eq.s32.totalorder %s11, 0
      %p73 = por %p71, %p72
      %p74 = scmp.ne.s32.totalorder %s63, %s66
      %p75 = scmp.eq.s32.totalorder %s16, 3
      %p76 = por %p74, %p75
      %p77 = scmp.ne.s32.totalorder %s66, %s67
      %p78 = scmp.eq.s32.totalorder %s16, 0
      %p79 = por %p77, %p78
      %p80 = scmp.ne.s32.totalorder %s66, %s67
      %p81 = scmp.eq.s32.totalorder %s17, 3
      %p82 = por %p80, %p81
      %p84 = scmp.ne.s32.totalorder %s67, %s83
      %p85 = scmp.eq.s32.totalorder %s17, 0
      %p86 = por %p84, %p85
      %s87 = ssub.s32 %s11, %s18
      %p88 = scmp.eq.s32.totalorder %s87, 0
      %s90 = sadd.s32 %s89, 1
      %s91 = scalar_select %p88, %s89, %s90
      %p94 = pneg %p88
      %p95 = scmp.eq.s32.totalorder %s11, 3
      %p96 = por %p94, %p95
      %p97 = scmp.ne.s32.totalorder %s89, %s92
      %p98 = scmp.eq.s32.totalorder %s11, 0
      %p99 = por %p97, %p98
      %p100 = scmp.ne.s32.totalorder %s89, %s92
      %p101 = scmp.eq.s32.totalorder %s16, 3
      %p102 = por %p100, %p101
      %p103 = scmp.ne.s32.totalorder %s92, %s93
      %p104 = scmp.eq.s32.totalorder %s16, 0
      %p105 = por %p103, %p104
      %p106 = scmp.ne.s32.totalorder %s92, %s93
      %p107 = scmp.eq.s32.totalorder %s17, 3
      %p108 = por %p106, %p107
      %p110 = scmp.ne.s32.totalorder %s93, %s109
      %p111 = scmp.eq.s32.totalorder %s17, 0
      %p112 = por %p110, %p111
      %s113 = ssub.s32 %s11, %s18
      %p114 = scmp.eq.s32.totalorder %s113, 0
      %s116 = sadd.s32 %s115, 1
      %s117 = scalar_select %p114, %s115, %s116
      %p120 = pneg %p114
      %p121 = scmp.eq.s32.totalorder %s11, 3
      %p122 = por %p120, %p121
      %p123 = scmp.ne.s32.totalorder %s115, %s118
      %p124 = scmp.eq.s32.totalorder %s11, 0
      %p125 = por %p123, %p124
      %p126 = scmp.ne.s32.totalorder %s115, %s118
      %p127 = scmp.eq.s32.totalorder %s16, 3
      %p128 = por %p126, %p127
      %p129 = scmp.ne.s32.totalorder %s118, %s119
      %p130 = scmp.eq.s32.totalorder %s16, 0
      %p131 = por %p129, %p130
      %p132 = scmp.ne.s32.totalorder %s118, %s119
      %p133 = scmp.eq.s32.totalorder %s17, 3
      %p134 = por %p132, %p133
      %p136 = scmp.ne.s32.totalorder %s119, %s135
      %p137 = scmp.eq.s32.totalorder %s17, 0
      %p138 = por %p136, %p137
      %p139 = scmp.le.s32.totalorder 1, %s11
      %p140 = scmp.lt.s32.totalorder %s11, 5
      %p141 = pnand %p139, %p140
      %p142 = pneg %p141
      // Predicated region
      $region9: #{glmnb_forward.1} parent=5 // pred_check
        _
      $region10: #{glmnb_forward.1} parent=5 // pred_check_branch
        %144 = sbr.rel (%p141) target = $region12
      $region11: #{glmnb_forward.1} parent=5 // pred_region
        %s145 = ssub.s32 %s11, 1
        // Predicated region
        $region13: #{glmnb_forward.1} parent=11 // pred_check
          %p146 = pneg %p32
        $region14: #{glmnb_forward.1} parent=11 // pred_check_branch
          %148 = sbr.rel (%p146) target = $region16
        $region15: #{glmnb_forward.1} parent=11 // pred_region
          %s150 = ssub.s32 16, 16
          %151 = vsyncadd [#allocation3], %s150
          %s153 = sshll.u32 %s0, 4
          %s154 = int_to_ptr.vmem [resolvable:$true] %s153
          %156 = dma.vmem_to_smem %s154, 16, [#allocation2], [#allocation3]
        $region16: #{glmnb_forward.1} parent=11 // pred_fallthru
          _
        // Predicated region
        $region17: #{glmnb_forward.1} parent=11 // pred_check
          %p157 = pneg %p53
        $region18: #{glmnb_forward.1} parent=11 // pred_check_branch
          %159 = sbr.rel (%p157) target = $region20
        $region19: #{glmnb_forward.1} parent=11 // pred_region
          _
        $region20: #{glmnb_forward.1} parent=11 // pred_fallthru
          _
      $region12: #{glmnb_forward.1} parent=5 // pred_fallthru
        _
      %p160 = scmp.lt.s32.totalorder %s11, 4
      // Predicated region
      $region21: #{glmnb_forward.1} parent=5 // pred_check
        %p161 = pneg %p160
      $region22: #{glmnb_forward.1} parent=5 // pred_check_branch
        %163 = sbr.rel (%p161) target = $region24
      $region23: #{glmnb_forward.1} parent=5 // pred_region
        // Predicated region
        $region25: #{glmnb_forward.1} parent=23 // pred_check
          %p164 = pneg %p73
        $region26: #{glmnb_forward.1} parent=23 // pred_check_branch
          %166 = sbr.rel (%p164) target = $region28
        $region27: #{glmnb_forward.1} parent=23 // pred_region
          %s167 = smul.u32 256, %s11
          %p168 = scmp.lt.s32.totalorder %s167, 1023
          %s169 = scalar_select %p168, %s167, 1023
          %s170 = smul.addr %s169, 8
          %s171 = scalar_lea.vmem %s2, %s170
          %s172 = smul.u32 256, %s11
        $region28: #{glmnb_forward.1} parent=23 // pred_fallthru
          _
        // Predicated region
        $region29: #{glmnb_forward.1} parent=23 // pred_check
          %p173 = pneg %p99
        $region30: #{glmnb_forward.1} parent=23 // pred_check_branch
          %175 = sbr.rel (%p173) target = $region32
        $region31: #{glmnb_forward.1} parent=23 // pred_region
          %s176 = smul.u32 16, %s11
          %p177 = scmp.lt.s32.totalorder %s176, 63
          %s178 = scalar_select %p177, %s176, 63
          %s179 = scalar_lea.vmem %s3, %s178
          %s180 = smul.u32 16, %s11
        $region32: #{glmnb_forward.1} parent=23 // pred_fallthru
          _
      $region24: #{glmnb_forward.1} parent=5 // pred_fallthru
        _
      %p181 = scmp.le.s32.totalorder 1, %s11
      %p182 = scmp.lt.s32.totalorder %s11, 5
      %p183 = pnand %p181, %p182
      %p184 = pneg %p183
      // Predicated region
      $region33: #{glmnb_forward.1} parent=5 // pred_check
        _
      $region34: #{glmnb_forward.1} parent=5 // pred_check_branch
        %186 = sbr.rel (%p183) target = $region36
      $region35: #{glmnb_forward.1} parent=5 // pred_region
        %s187 = ssub.s32 %s11, 1
        // Predicated region
        $region37: #{glmnb_forward.1} parent=35 // pred_check
          %p188 = pneg %p32
        $region38: #{glmnb_forward.1} parent=35 // pred_check_branch
          %190 = sbr.rel (%p188) target = $region40
        $region39: #{glmnb_forward.1} parent=35 // pred_region
          %191 = dma.done [#allocation3], 16
        $region40: #{glmnb_forward.1} parent=35 // pred_fallthru
          _
        %192 = sfence
        %p193 = pneg %p32
        %p194 = pneg %p29
        %p195 = pneg %p53
        %p196 = pneg %p50
        %s197 = smul.u32 256, %s16
        %p198 = scmp.lt.s32.totalorder %s197, 1023
        %s199 = scalar_select %p198, %s197, 1023
        %s200 = smul.addr %s199, 8
        %s201 = scalar_lea.vmem %s2, %s200
        %p202 = pneg %p79
        %p203 = pneg %p76
        %s204 = smul.u32 16, %s16
        %p205 = scmp.lt.s32.totalorder %s204, 63
        %s206 = scalar_select %p205, %s204, 63
        %s207 = scalar_lea.vmem %s3, %s206
        %p208 = pneg %p105
        %p209 = pneg %p102
        %p210 = pneg %p131
        %p211 = pneg %p128
        %s212 = smul.u32 16, %s16
        %p213 = scmp.lt.s32.totalorder %s212, 63
        %s214 = scalar_select %p213, %s212, 63
        %s215 = scalar_lea.vmem %s4, %s214
        %s216 = smul.u32 256, %s16
        %p217 = scmp.lt.s32.totalorder %s216, 1023
        %s218 = scalar_select %p217, %s216, 1023
        %s219 = smul.addr %s218, 8
        %s220 = scalar_lea.vmem %s2, %s219
        %s221 = smul.u32 256, %s16
        %s222 = smul.u32 16, %s16
        %p223 = scmp.lt.s32.totalorder %s222, 63
        %s224 = scalar_select %p223, %s222, 63
        %s225 = scalar_lea.vmem %s3, %s224
        %s226 = smul.u32 16, %s16
        %s227 = smul.u32 16, %s16
        %p228 = scmp.lt.s32.totalorder %s227, 63
        %s229 = scalar_select %p228, %s227, 63
        %s230 = scalar_lea.vmem %s4, %s229
        %s231 = smul.u32 16, %s16
        %s232 = sld [smem:[#allocation2]]
        %s233 = sld [smem:[#allocation2 + $0x1]]
        %s234 = sld [smem:[#allocation2 + $0x2]]
        %v235 = vld [vmem:[%s1] sm:$0xff]
        %v236 = vld [vmem:[%s220] sm:$0xff]
        %v237 = vld [vmem:[%s220 + $0x8] sm:$0xff]
        %v238 = vld [vmem:[%s220 + $0x10] sm:$0xff]
        %v239 = vld [vmem:[%s220 + $0x18] sm:$0xff]
        %v240 = vld [vmem:[%s220 + $0x20] sm:$0xff]
        %v241 = vld [vmem:[%s220 + $0x28] sm:$0xff]
        %v242 = vld [vmem:[%s220 + $0x30] sm:$0xff]
        %v243 = vld [vmem:[%s220 + $0x38] sm:$0xff]
        %v244 = vld [vmem:[%s220 + $0x40] sm:$0xff]
        %v245 = vld [vmem:[%s220 + $0x48] sm:$0xff]
        %v246 = vld [vmem:[%s220 + $0x50] sm:$0xff]
        %v247 = vld [vmem:[%s220 + $0x58] sm:$0xff]
        %v248 = vld [vmem:[%s220 + $0x60] sm:$0xff]
        %v249 = vld [vmem:[%s220 + $0x68] sm:$0xff]
        %v250 = vld [vmem:[%s220 + $0x70] sm:$0xff]
        %v251 = vld [vmem:[%s220 + $0x78] sm:$0xff]
        %v252 = vld [vmem:[%s220 + $0x80] sm:$0xff]
        %v253 = vld [vmem:[%s220 + $0x88] sm:$0xff]
        %v254 = vld [vmem:[%s220 + $0x90] sm:$0xff]
        %v255 = vld [vmem:[%s220 + $0x98] sm:$0xff]
        %v256 = vld [vmem:[%s220 + $0xa0] sm:$0xff]
        %v257 = vld [vmem:[%s220 + $0xa8] sm:$0xff]
        %v258 = vld [vmem:[%s220 + $0xb0] sm:$0xff]
        %v259 = vld [vmem:[%s220 + $0xb8] sm:$0xff]
        %v260 = vld [vmem:[%s220 + $0xc0] sm:$0xff]
        %v261 = vld [vmem:[%s220 + $0xc8] sm:$0xff]
        %v262 = vld [vmem:[%s220 + $0xd0] sm:$0xff]
        %v263 = vld [vmem:[%s220 + $0xd8] sm:$0xff]
        %v264 = vld [vmem:[%s220 + $0xe0] sm:$0xff]
        %v265 = vld [vmem:[%s220 + $0xe8] sm:$0xff]
        %v266 = vld [vmem:[%s220 + $0xf0] sm:$0xff]
        %v267 = vld [vmem:[%s220 + $0xf8] sm:$0xff]
        %v268 = vld [vmem:[%s220 + $0x100] sm:$0xff]
        %v269 = vld [vmem:[%s220 + $0x108] sm:$0xff]
        %v270 = vld [vmem:[%s220 + $0x110] sm:$0xff]
        %v271 = vld [vmem:[%s220 + $0x118] sm:$0xff]
        %v272 = vld [vmem:[%s220 + $0x120] sm:$0xff]
        %v273 = vld [vmem:[%s220 + $0x128] sm:$0xff]
        %v274 = vld [vmem:[%s220 + $0x130] sm:$0xff]
        %v275 = vld [vmem:[%s220 + $0x138] sm:$0xff]
        %v276 = vld [vmem:[%s220 + $0x140] sm:$0xff]
        %v277 = vld [vmem:[%s220 + $0x148] sm:$0xff]
        %v278 = vld [vmem:[%s220 + $0x150] sm:$0xff]
        %v279 = vld [vmem:[%s220 + $0x158] sm:$0xff]
        %v280 = vld [vmem:[%s220 + $0x160] sm:$0xff]
        %v281 = vld [vmem:[%s220 + $0x168] sm:$0xff]
        %v282 = vld [vmem:[%s220 + $0x170] sm:$0xff]
        %v283 = vld [vmem:[%s220 + $0x178] sm:$0xff]
        %v284 = vld [vmem:[%s220 + $0x180] sm:$0xff]
        %v285 = vld [vmem:[%s220 + $0x188] sm:$0xff]
        %v286 = vld [vmem:[%s220 + $0x190] sm:$0xff]
        %v287 = vld [vmem:[%s220 + $0x198] sm:$0xff]
        %v288 = vld [vmem:[%s220 + $0x1a0] sm:$0xff]
        %v289 = vld [vmem:[%s220 + $0x1a8] sm:$0xff]
        %v290 = vld [vmem:[%s220 + $0x1b0] sm:$0xff]
        %v291 = vld [vmem:[%s220 + $0x1b8] sm:$0xff]
        %v292 = vld [vmem:[%s220 + $0x1c0] sm:$0xff]
        %v293 = vld [vmem:[%s220 + $0x1c8] sm:$0xff]
        %v294 = vld [vmem:[%s220 + $0x1d0] sm:$0xff]
        %v295 = vld [vmem:[%s220 + $0x1d8] sm:$0xff]
        %v296 = vld [vmem:[%s220 + $0x1e0] sm:$0xff]
        %v297 = vld [vmem:[%s220 + $0x1e8] sm:$0xff]
        %v298 = vld [vmem:[%s220 + $0x1f0] sm:$0xff]
        %v299 = vld [vmem:[%s220 + $0x1f8] sm:$0xff]
        %v300 = vld [vmem:[%s220 + $0x200] sm:$0xff]
        %v301 = vld [vmem:[%s220 + $0x208] sm:$0xff]
        %v302 = vld [vmem:[%s220 + $0x210] sm:$0xff]
        %v303 = vld [vmem:[%s220 + $0x218] sm:$0xff]
        %v304 = vld [vmem:[%s220 + $0x220] sm:$0xff]
        %v305 = vld [vmem:[%s220 + $0x228] sm:$0xff]
        %v306 = vld [vmem:[%s220 + $0x230] sm:$0xff]
        %v307 = vld [vmem:[%s220 + $0x238] sm:$0xff]
        %v308 = vld [vmem:[%s220 + $0x240] sm:$0xff]
        %v309 = vld [vmem:[%s220 + $0x248] sm:$0xff]
        %v310 = vld [vmem:[%s220 + $0x250] sm:$0xff]
        %v311 = vld [vmem:[%s220 + $0x258] sm:$0xff]
        %v312 = vld [vmem:[%s220 + $0x260] sm:$0xff]
        %v313 = vld [vmem:[%s220 + $0x268] sm:$0xff]
        %v314 = vld [vmem:[%s220 + $0x270] sm:$0xff]
        %v315 = vld [vmem:[%s220 + $0x278] sm:$0xff]
        %v316 = vld [vmem:[%s220 + $0x280] sm:$0xff]
        %v317 = vld [vmem:[%s220 + $0x288] sm:$0xff]
        %v318 = vld [vmem:[%s220 + $0x290] sm:$0xff]
        %v319 = vld [vmem:[%s220 + $0x298] sm:$0xff]
        %v320 = vld [vmem:[%s220 + $0x2a0] sm:$0xff]
        %v321 = vld [vmem:[%s220 + $0x2a8] sm:$0xff]
        %v322 = vld [vmem:[%s220 + $0x2b0] sm:$0xff]
        %v323 = vld [vmem:[%s220 + $0x2b8] sm:$0xff]
        %v324 = vld [vmem:[%s220 + $0x2c0] sm:$0xff]
        %v325 = vld [vmem:[%s220 + $0x2c8] sm:$0xff]
        %v326 = vld [vmem:[%s220 + $0x2d0] sm:$0xff]
        %v327 = vld [vmem:[%s220 + $0x2d8] sm:$0xff]
        %v328 = vld [vmem:[%s220 + $0x2e0] sm:$0xff]
        %v329 = vld [vmem:[%s220 + $0x2e8] sm:$0xff]
        %v330 = vld [vmem:[%s220 + $0x2f0] sm:$0xff]
        %v331 = vld [vmem:[%s220 + $0x2f8] sm:$0xff]
        %v332 = vld [vmem:[%s220 + $0x300] sm:$0xff]
        %v333 = vld [vmem:[%s220 + $0x308] sm:$0xff]
        %v334 = vld [vmem:[%s220 + $0x310] sm:$0xff]
        %v335 = vld [vmem:[%s220 + $0x318] sm:$0xff]
        %v336 = vld [vmem:[%s220 + $0x320] sm:$0xff]
        %v337 = vld [vmem:[%s220 + $0x328] sm:$0xff]
        %v338 = vld [vmem:[%s220 + $0x330] sm:$0xff]
        %v339 = vld [vmem:[%s220 + $0x338] sm:$0xff]
        %v340 = vld [vmem:[%s220 + $0x340] sm:$0xff]
        %v341 = vld [vmem:[%s220 + $0x348] sm:$0xff]
        %v342 = vld [vmem:[%s220 + $0x350] sm:$0xff]
        %v343 = vld [vmem:[%s220 + $0x358] sm:$0xff]
        %v344 = vld [vmem:[%s220 + $0x360] sm:$0xff]
        %v345 = vld [vmem:[%s220 + $0x368] sm:$0xff]
        %v346 = vld [vmem:[%s220 + $0x370] sm:$0xff]
        %v347 = vld [vmem:[%s220 + $0x378] sm:$0xff]
        %v348 = vld [vmem:[%s220 + $0x380] sm:$0xff]
        %v349 = vld [vmem:[%s220 + $0x388] sm:$0xff]
        %v350 = vld [vmem:[%s220 + $0x390] sm:$0xff]
        %v351 = vld [vmem:[%s220 + $0x398] sm:$0xff]
        %v352 = vld [vmem:[%s220 + $0x3a0] sm:$0xff]
        %v353 = vld [vmem:[%s220 + $0x3a8] sm:$0xff]
        %v354 = vld [vmem:[%s220 + $0x3b0] sm:$0xff]
        %v355 = vld [vmem:[%s220 + $0x3b8] sm:$0xff]
        %v356 = vld [vmem:[%s220 + $0x3c0] sm:$0xff]
        %v357 = vld [vmem:[%s220 + $0x3c8] sm:$0xff]
        %v358 = vld [vmem:[%s220 + $0x3d0] sm:$0xff]
        %v359 = vld [vmem:[%s220 + $0x3d8] sm:$0xff]
        %v360 = vld [vmem:[%s220 + $0x3e0] sm:$0xff]
        %v361 = vld [vmem:[%s220 + $0x3e8] sm:$0xff]
        %v362 = vld [vmem:[%s220 + $0x3f0] sm:$0xff]
        %v363 = vld [vmem:[%s220 + $0x3f8] sm:$0xff]
        %v364 = vld [vmem:[%s220 + $0x400] sm:$0xff]
        %v365 = vld [vmem:[%s220 + $0x408] sm:$0xff]
        %v366 = vld [vmem:[%s220 + $0x410] sm:$0xff]
        %v367 = vld [vmem:[%s220 + $0x418] sm:$0xff]
        %v368 = vld [vmem:[%s220 + $0x420] sm:$0xff]
        %v369 = vld [vmem:[%s220 + $0x428] sm:$0xff]
        %v370 = vld [vmem:[%s220 + $0x430] sm:$0xff]
        %v371 = vld [vmem:[%s220 + $0x438] sm:$0xff]
        %v372 = vld [vmem:[%s220 + $0x440] sm:$0xff]
        %v373 = vld [vmem:[%s220 + $0x448] sm:$0xff]
        %v374 = vld [vmem:[%s220 + $0x450] sm:$0xff]
        %v375 = vld [vmem:[%s220 + $0x458] sm:$0xff]
        %v376 = vld [vmem:[%s220 + $0x460] sm:$0xff]
        %v377 = vld [vmem:[%s220 + $0x468] sm:$0xff]
        %v378 = vld [vmem:[%s220 + $0x470] sm:$0xff]
        %v379 = vld [vmem:[%s220 + $0x478] sm:$0xff]
        %v380 = vld [vmem:[%s220 + $0x480] sm:$0xff]
        %v381 = vld [vmem:[%s220 + $0x488] sm:$0xff]
        %v382 = vld [vmem:[%s220 + $0x490] sm:$0xff]
        %v383 = vld [vmem:[%s220 + $0x498] sm:$0xff]
        %v384 = vld [vmem:[%s220 + $0x4a0] sm:$0xff]
        %v385 = vld [vmem:[%s220 + $0x4a8] sm:$0xff]
        %v386 = vld [vmem:[%s220 + $0x4b0] sm:$0xff]
        %v387 = vld [vmem:[%s220 + $0x4b8] sm:$0xff]
        %v388 = vld [vmem:[%s220 + $0x4c0] sm:$0xff]
        %v389 = vld [vmem:[%s220 + $0x4c8] sm:$0xff]
        %v390 = vld [vmem:[%s220 + $0x4d0] sm:$0xff]
        %v391 = vld [vmem:[%s220 + $0x4d8] sm:$0xff]
        %v392 = vld [vmem:[%s220 + $0x4e0] sm:$0xff]
        %v393 = vld [vmem:[%s220 + $0x4e8] sm:$0xff]
        %v394 = vld [vmem:[%s220 + $0x4f0] sm:$0xff]
        %v395 = vld [vmem:[%s220 + $0x4f8] sm:$0xff]
        %v396 = vld [vmem:[%s220 + $0x500] sm:$0xff]
        %v397 = vld [vmem:[%s220 + $0x508] sm:$0xff]
        %v398 = vld [vmem:[%s220 + $0x510] sm:$0xff]
        %v399 = vld [vmem:[%s220 + $0x518] sm:$0xff]
        %v400 = vld [vmem:[%s220 + $0x520] sm:$0xff]
        %v401 = vld [vmem:[%s220 + $0x528] sm:$0xff]
        %v402 = vld [vmem:[%s220 + $0x530] sm:$0xff]
        %v403 = vld [vmem:[%s220 + $0x538] sm:$0xff]
        %v404 = vld [vmem:[%s220 + $0x540] sm:$0xff]
        %v405 = vld [vmem:[%s220 + $0x548] sm:$0xff]
        %v406 = vld [vmem:[%s220 + $0x550] sm:$0xff]
        %v407 = vld [vmem:[%s220 + $0x558] sm:$0xff]
        %v408 = vld [vmem:[%s220 + $0x560] sm:$0xff]
        %v409 = vld [vmem:[%s220 + $0x568] sm:$0xff]
        %v410 = vld [vmem:[%s220 + $0x570] sm:$0xff]
        %v411 = vld [vmem:[%s220 + $0x578] sm:$0xff]
        %v412 = vld [vmem:[%s220 + $0x580] sm:$0xff]
        %v413 = vld [vmem:[%s220 + $0x588] sm:$0xff]
        %v414 = vld [vmem:[%s220 + $0x590] sm:$0xff]
        %v415 = vld [vmem:[%s220 + $0x598] sm:$0xff]
        %v416 = vld [vmem:[%s220 + $0x5a0] sm:$0xff]
        %v417 = vld [vmem:[%s220 + $0x5a8] sm:$0xff]
        %v418 = vld [vmem:[%s220 + $0x5b0] sm:$0xff]
        %v419 = vld [vmem:[%s220 + $0x5b8] sm:$0xff]
        %v420 = vld [vmem:[%s220 + $0x5c0] sm:$0xff]
        %v421 = vld [vmem:[%s220 + $0x5c8] sm:$0xff]
        %v422 = vld [vmem:[%s220 + $0x5d0] sm:$0xff]
        %v423 = vld [vmem:[%s220 + $0x5d8] sm:$0xff]
        %v424 = vld [vmem:[%s220 + $0x5e0] sm:$0xff]
        %v425 = vld [vmem:[%s220 + $0x5e8] sm:$0xff]
        %v426 = vld [vmem:[%s220 + $0x5f0] sm:$0xff]
        %v427 = vld [vmem:[%s220 + $0x5f8] sm:$0xff]
        %v428 = vld [vmem:[%s220 + $0x600] sm:$0xff]
        %v429 = vld [vmem:[%s220 + $0x608] sm:$0xff]
        %v430 = vld [vmem:[%s220 + $0x610] sm:$0xff]
        %v431 = vld [vmem:[%s220 + $0x618] sm:$0xff]
        %v432 = vld [vmem:[%s220 + $0x620] sm:$0xff]
        %v433 = vld [vmem:[%s220 + $0x628] sm:$0xff]
        %v434 = vld [vmem:[%s220 + $0x630] sm:$0xff]
        %v435 = vld [vmem:[%s220 + $0x638] sm:$0xff]
        %v436 = vld [vmem:[%s220 + $0x640] sm:$0xff]
        %v437 = vld [vmem:[%s220 + $0x648] sm:$0xff]
        %v438 = vld [vmem:[%s220 + $0x650] sm:$0xff]
        %v439 = vld [vmem:[%s220 + $0x658] sm:$0xff]
        %v440 = vld [vmem:[%s220 + $0x660] sm:$0xff]
        %v441 = vld [vmem:[%s220 + $0x668] sm:$0xff]
        %v442 = vld [vmem:[%s220 + $0x670] sm:$0xff]
        %v443 = vld [vmem:[%s220 + $0x678] sm:$0xff]
        %v444 = vld [vmem:[%s220 + $0x680] sm:$0xff]
        %v445 = vld [vmem:[%s220 + $0x688] sm:$0xff]
        %v446 = vld [vmem:[%s220 + $0x690] sm:$0xff]
        %v447 = vld [vmem:[%s220 + $0x698] sm:$0xff]
        %v448 = vld [vmem:[%s220 + $0x6a0] sm:$0xff]
        %v449 = vld [vmem:[%s220 + $0x6a8] sm:$0xff]
        %v450 = vld [vmem:[%s220 + $0x6b0] sm:$0xff]
        %v451 = vld [vmem:[%s220 + $0x6b8] sm:$0xff]
        %v452 = vld [vmem:[%s220 + $0x6c0] sm:$0xff]
        %v453 = vld [vmem:[%s220 + $0x6c8] sm:$0xff]
        %v454 = vld [vmem:[%s220 + $0x6d0] sm:$0xff]
        %v455 = vld [vmem:[%s220 + $0x6d8] sm:$0xff]
        %v456 = vld [vmem:[%s220 + $0x6e0] sm:$0xff]
        %v457 = vld [vmem:[%s220 + $0x6e8] sm:$0xff]
        %v458 = vld [vmem:[%s220 + $0x6f0] sm:$0xff]
        %v459 = vld [vmem:[%s220 + $0x6f8] sm:$0xff]
        %v460 = vld [vmem:[%s220 + $0x700] sm:$0xff]
        %v461 = vld [vmem:[%s220 + $0x708] sm:$0xff]
        %v462 = vld [vmem:[%s220 + $0x710] sm:$0xff]
        %v463 = vld [vmem:[%s220 + $0x718] sm:$0xff]
        %v464 = vld [vmem:[%s220 + $0x720] sm:$0xff]
        %v465 = vld [vmem:[%s220 + $0x728] sm:$0xff]
        %v466 = vld [vmem:[%s220 + $0x730] sm:$0xff]
        %v467 = vld [vmem:[%s220 + $0x738] sm:$0xff]
        %v468 = vld [vmem:[%s220 + $0x740] sm:$0xff]
        %v469 = vld [vmem:[%s220 + $0x748] sm:$0xff]
        %v470 = vld [vmem:[%s220 + $0x750] sm:$0xff]
        %v471 = vld [vmem:[%s220 + $0x758] sm:$0xff]
        %v472 = vld [vmem:[%s220 + $0x760] sm:$0xff]
        %v473 = vld [vmem:[%s220 + $0x768] sm:$0xff]
        %v474 = vld [vmem:[%s220 + $0x770] sm:$0xff]
        %v475 = vld [vmem:[%s220 + $0x778] sm:$0xff]
        %v476 = vld [vmem:[%s220 + $0x780] sm:$0xff]
        %v477 = vld [vmem:[%s220 + $0x788] sm:$0xff]
        %v478 = vld [vmem:[%s220 + $0x790] sm:$0xff]
        %v479 = vld [vmem:[%s220 + $0x798] sm:$0xff]
        %v480 = vld [vmem:[%s220 + $0x7a0] sm:$0xff]
        %v481 = vld [vmem:[%s220 + $0x7a8] sm:$0xff]
        %v482 = vld [vmem:[%s220 + $0x7b0] sm:$0xff]
        %v483 = vld [vmem:[%s220 + $0x7b8] sm:$0xff]
        %v484 = vld [vmem:[%s220 + $0x7c0] sm:$0xff]
        %v485 = vld [vmem:[%s220 + $0x7c8] sm:$0xff]
        %v486 = vld [vmem:[%s220 + $0x7d0] sm:$0xff]
        %v487 = vld [vmem:[%s220 + $0x7d8] sm:$0xff]
        %v488 = vld [vmem:[%s220 + $0x7e0] sm:$0xff]
        %v489 = vld [vmem:[%s220 + $0x7e8] sm:$0xff]
        %v490 = vld [vmem:[%s220 + $0x7f0] sm:$0xff]
        %v491 = vld [vmem:[%s220 + $0x7f8] sm:$0xff]
        %vm492 = vcmask 261120
        %v494 = vsel %vm492, %v235, 0
        %v497 = vsel %vm492, %v236, 0
        %v500 = vsel %vm492, %v237, 0
        %v503 = vsel %vm492, %v238, 0
        %v506 = vsel %vm492, %v239, 0
        %v509 = vsel %vm492, %v240, 0
        %v512 = vsel %vm492, %v241, 0
        %v515 = vsel %vm492, %v242, 0
        %v518 = vsel %vm492, %v243, 0
        %v521 = vsel %vm492, %v244, 0
        %v524 = vsel %vm492, %v245, 0
        %v527 = vsel %vm492, %v246, 0
        %v530 = vsel %vm492, %v247, 0
        %v533 = vsel %vm492, %v248, 0
        %v536 = vsel %vm492, %v249, 0
        %v539 = vsel %vm492, %v250, 0
        %v542 = vsel %vm492, %v251, 0
        %v545 = vsel %vm492, %v252, 0
        %v548 = vsel %vm492, %v253, 0
        %v551 = vsel %vm492, %v254, 0
        %v554 = vsel %vm492, %v255, 0
        %v557 = vsel %vm492, %v256, 0
        %v560 = vsel %vm492, %v257, 0
        %v563 = vsel %vm492, %v258, 0
        %v566 = vsel %vm492, %v259, 0
        %v569 = vsel %vm492, %v260, 0
        %v572 = vsel %vm492, %v261, 0
        %v575 = vsel %vm492, %v262, 0
        %v578 = vsel %vm492, %v263, 0
        %v581 = vsel %vm492, %v264, 0
        %v584 = vsel %vm492, %v265, 0
        %v587 = vsel %vm492, %v266, 0
        %v590 = vsel %vm492, %v267, 0
        %v593 = vsel %vm492, %v268, 0
        %v596 = vsel %vm492, %v269, 0
        %v599 = vsel %vm492, %v270, 0
        %v602 = vsel %vm492, %v271, 0
        %v605 = vsel %vm492, %v272, 0
        %v608 = vsel %vm492, %v273, 0
        %v611 = vsel %vm492, %v274, 0
        %v614 = vsel %vm492, %v275, 0
        %v617 = vsel %vm492, %v276, 0
        %v620 = vsel %vm492, %v277, 0
        %v623 = vsel %vm492, %v278, 0
        %v626 = vsel %vm492, %v279, 0
        %v629 = vsel %vm492, %v280, 0
        %v632 = vsel %vm492, %v281, 0
        %v635 = vsel %vm492, %v282, 0
        %v638 = vsel %vm492, %v283, 0
        %v641 = vsel %vm492, %v284, 0
        %v644 = vsel %vm492, %v285, 0
        %v647 = vsel %vm492, %v286, 0
        %v650 = vsel %vm492, %v287, 0
        %v653 = vsel %vm492, %v288, 0
        %v656 = vsel %vm492, %v289, 0
        %v659 = vsel %vm492, %v290, 0
        %v662 = vsel %vm492, %v291, 0
        %v665 = vsel %vm492, %v292, 0
        %v668 = vsel %vm492, %v293, 0
        %v671 = vsel %vm492, %v294, 0
        %v674 = vsel %vm492, %v295, 0
        %v677 = vsel %vm492, %v296, 0
        %v680 = vsel %vm492, %v297, 0
        %v683 = vsel %vm492, %v298, 0
        %v686 = vsel %vm492, %v299, 0
        %v689 = vsel %vm492, %v300, 0
        %v692 = vsel %vm492, %v301, 0
        %v695 = vsel %vm492, %v302, 0
        %v698 = vsel %vm492, %v303, 0
        %v701 = vsel %vm492, %v304, 0
        %v704 = vsel %vm492, %v305, 0
        %v707 = vsel %vm492, %v306, 0
        %v710 = vsel %vm492, %v307, 0
        %v713 = vsel %vm492, %v308, 0
        %v716 = vsel %vm492, %v309, 0
        %v719 = vsel %vm492, %v310, 0
        %v722 = vsel %vm492, %v311, 0
        %v725 = vsel %vm492, %v312, 0
        %v728 = vsel %vm492, %v313, 0
        %v731 = vsel %vm492, %v314, 0
        %v734 = vsel %vm492, %v315, 0
        %v737 = vsel %vm492, %v316, 0
        %v740 = vsel %vm492, %v317, 0
        %v743 = vsel %vm492, %v318, 0
        %v746 = vsel %vm492, %v319, 0
        %v749 = vsel %vm492, %v320, 0
        %v752 = vsel %vm492, %v321, 0
        %v755 = vsel %vm492, %v322, 0
        %v758 = vsel %vm492, %v323, 0
        %v761 = vsel %vm492, %v324, 0
        %v764 = vsel %vm492, %v325, 0
        %v767 = vsel %vm492, %v326, 0
        %v770 = vsel %vm492, %v327, 0
        %v773 = vsel %vm492, %v328, 0
        %v776 = vsel %vm492, %v329, 0
        %v779 = vsel %vm492, %v330, 0
        %v782 = vsel %vm492, %v331, 0
        %v785 = vsel %vm492, %v332, 0
        %v788 = vsel %vm492, %v333, 0
        %v791 = vsel %vm492, %v334, 0
        %v794 = vsel %vm492, %v335, 0
        %v797 = vsel %vm492, %v336, 0
        %v800 = vsel %vm492, %v337, 0
        %v803 = vsel %vm492, %v338, 0
        %v806 = vsel %vm492, %v339, 0
        %v809 = vsel %vm492, %v340, 0
        %v812 = vsel %vm492, %v341, 0
        %v815 = vsel %vm492, %v342, 0
        %v818 = vsel %vm492, %v343, 0
        %v821 = vsel %vm492, %v344, 0
        %v824 = vsel %vm492, %v345, 0
        %v827 = vsel %vm492, %v346, 0
        %v830 = vsel %vm492, %v347, 0
        %v833 = vsel %vm492, %v348, 0
        %v836 = vsel %vm492, %v349, 0
        %v839 = vsel %vm492, %v350, 0
        %v842 = vsel %vm492, %v351, 0
        %v845 = vsel %vm492, %v352, 0
        %v848 = vsel %vm492, %v353, 0
        %v851 = vsel %vm492, %v354, 0
        %v854 = vsel %vm492, %v355, 0
        %v857 = vsel %vm492, %v356, 0
        %v860 = vsel %vm492, %v357, 0
        %v863 = vsel %vm492, %v358, 0
        %v866 = vsel %vm492, %v359, 0
        %v869 = vsel %vm492, %v360, 0
        %v872 = vsel %vm492, %v361, 0
        %v875 = vsel %vm492, %v362, 0
        %v878 = vsel %vm492, %v363, 0
        %v881 = vsel %vm492, %v364, 0
        %v884 = vsel %vm492, %v365, 0
        %v887 = vsel %vm492, %v366, 0
        %v890 = vsel %vm492, %v367, 0
        %v893 = vsel %vm492, %v368, 0
        %v896 = vsel %vm492, %v369, 0
        %v899 = vsel %vm492, %v370, 0
        %v902 = vsel %vm492, %v371, 0
        %v905 = vsel %vm492, %v372, 0
        %v908 = vsel %vm492, %v373, 0
        %v911 = vsel %vm492, %v374, 0
        %v914 = vsel %vm492, %v375, 0
        %v917 = vsel %vm492, %v376, 0
        %v920 = vsel %vm492, %v377, 0
        %v923 = vsel %vm492, %v378, 0
        %v926 = vsel %vm492, %v379, 0
        %v929 = vsel %vm492, %v380, 0
        %v932 = vsel %vm492, %v381, 0
        %v935 = vsel %vm492, %v382, 0
        %v938 = vsel %vm492, %v383, 0
        %v941 = vsel %vm492, %v384, 0
        %v944 = vsel %vm492, %v385, 0
        %v947 = vsel %vm492, %v386, 0
        %v950 = vsel %vm492, %v387, 0
        %v953 = vsel %vm492, %v388, 0
        %v956 = vsel %vm492, %v389, 0
        %v959 = vsel %vm492, %v390, 0
        %v962 = vsel %vm492, %v391, 0
        %v965 = vsel %vm492, %v392, 0
        %v968 = vsel %vm492, %v393, 0
        %v971 = vsel %vm492, %v394, 0
        %v974 = vsel %vm492, %v395, 0
        %v977 = vsel %vm492, %v396, 0
        %v980 = vsel %vm492, %v397, 0
        %v983 = vsel %vm492, %v398, 0
        %v986 = vsel %vm492, %v399, 0
        %v989 = vsel %vm492, %v400, 0
        %v992 = vsel %vm492, %v401, 0
        %v995 = vsel %vm492, %v402, 0
        %v998 = vsel %vm492, %v403, 0
        %v1001 = vsel %vm492, %v404, 0
        %v1004 = vsel %vm492, %v405, 0
        %v1007 = vsel %vm492, %v406, 0
        %v1010 = vsel %vm492, %v407, 0
        %v1013 = vsel %vm492, %v408, 0
        %v1016 = vsel %vm492, %v409, 0
        %v1019 = vsel %vm492, %v410, 0
        %v1022 = vsel %vm492, %v411, 0
        %v1025 = vsel %vm492, %v412, 0
        %v1028 = vsel %vm492, %v413, 0
        %v1031 = vsel %vm492, %v414, 0
        %v1034 = vsel %vm492, %v415, 0
        %v1037 = vsel %vm492, %v416, 0
        %v1040 = vsel %vm492, %v417, 0
        %v1043 = vsel %vm492, %v418, 0
        %v1046 = vsel %vm492, %v419, 0
        %v1049 = vsel %vm492, %v420, 0
        %v1052 = vsel %vm492, %v421, 0
        %v1055 = vsel %vm492, %v422, 0
        %v1058 = vsel %vm492, %v423, 0
        %v1061 = vsel %vm492, %v424, 0
        %v1064 = vsel %vm492, %v425, 0
        %v1067 = vsel %vm492, %v426, 0
        %v1070 = vsel %vm492, %v427, 0
        %v1073 = vsel %vm492, %v428, 0
        %v1076 = vsel %vm492, %v429, 0
        %v1079 = vsel %vm492, %v430, 0
        %v1082 = vsel %vm492, %v431, 0
        %v1085 = vsel %vm492, %v432, 0
        %v1088 = vsel %vm492, %v433, 0
        %v1091 = vsel %vm492, %v434, 0
        %v1094 = vsel %vm492, %v435, 0
        %v1097 = vsel %vm492, %v436, 0
        %v1100 = vsel %vm492, %v437, 0
        %v1103 = vsel %vm492, %v438, 0
        %v1106 = vsel %vm492, %v439, 0
        %v1109 = vsel %vm492, %v440, 0
        %v1112 = vsel %vm492, %v441, 0
        %v1115 = vsel %vm492, %v442, 0
        %v1118 = vsel %vm492, %v443, 0
        %v1121 = vsel %vm492, %v444, 0
        %v1124 = vsel %vm492, %v445, 0
        %v1127 = vsel %vm492, %v446, 0
        %v1130 = vsel %vm492, %v447, 0
        %v1133 = vsel %vm492, %v448, 0
        %v1136 = vsel %vm492, %v449, 0
        %v1139 = vsel %vm492, %v450, 0
        %v1142 = vsel %vm492, %v451, 0
        %v1145 = vsel %vm492, %v452, 0
        %v1148 = vsel %vm492, %v453, 0
        %v1151 = vsel %vm492, %v454, 0
        %v1154 = vsel %vm492, %v455, 0
        %v1157 = vsel %vm492, %v456, 0
        %v1160 = vsel %vm492, %v457, 0
        %v1163 = vsel %vm492, %v458, 0
        %v1166 = vsel %vm492, %v459, 0
        %v1169 = vsel %vm492, %v460, 0
        %v1172 = vsel %vm492, %v461, 0
        %v1175 = vsel %vm492, %v462, 0
        %v1178 = vsel %vm492, %v463, 0
        %v1181 = vsel %vm492, %v464, 0
        %v1184 = vsel %vm492, %v465, 0
        %v1187 = vsel %vm492, %v466, 0
        %v1190 = vsel %vm492, %v467, 0
        %v1193 = vsel %vm492, %v468, 0
        %v1196 = vsel %vm492, %v469, 0
        %v1199 = vsel %vm492, %v470, 0
        %v1202 = vsel %vm492, %v471, 0
        %v1205 = vsel %vm492, %v472, 0
        %v1208 = vsel %vm492, %v473, 0
        %v1211 = vsel %vm492, %v474, 0
        %v1214 = vsel %vm492, %v475, 0
        %v1217 = vsel %vm492, %v476, 0
        %v1220 = vsel %vm492, %v477, 0
        %v1223 = vsel %vm492, %v478, 0
        %v1226 = vsel %vm492, %v479, 0
        %v1229 = vsel %vm492, %v480, 0
        %v1232 = vsel %vm492, %v481, 0
        %v1235 = vsel %vm492, %v482, 0
        %v1238 = vsel %vm492, %v483, 0
        %v1241 = vsel %vm492, %v484, 0
        %v1244 = vsel %vm492, %v485, 0
        %v1247 = vsel %vm492, %v486, 0
        %v1250 = vsel %vm492, %v487, 0
        %v1253 = vsel %vm492, %v488, 0
        %v1256 = vsel %vm492, %v489, 0
        %v1259 = vsel %vm492, %v490, 0
        %v1262 = vsel %vm492, %v491, 0
        %1264 = vmatprep.subr.mxu0 0.0
        %1265 = vmatpush1.xpose.msra.mxu0 %v542
        %1266 = vmatprep.subr.mxu0 0.0
        %1267 = vmatpush1.xpose.msra.mxu0 %v539
        %1268 = vmatprep.subr.mxu0 0.0
        %1269 = vmatpush1.xpose.msra.mxu0 %v536
        %1270 = vmatprep.subr.mxu0 0.0
        %1271 = vmatpush1.xpose.msra.mxu0 %v533
        %1272 = vmatprep.subr.mxu0 0.0
        %1273 = vmatpush1.xpose.msra.mxu0 %v530
        %1274 = vmatprep.subr.mxu0 0.0
        %1275 = vmatpush1.xpose.msra.mxu0 %v527
        %1276 = vmatprep.subr.mxu0 0.0
        %1277 = vmatpush1.xpose.msra.mxu0 %v524
        %1278 = vmatprep.subr.mxu0 0.0
        %1279 = vmatpush1.xpose.msra.mxu0 %v521
        %1280 = vmatprep.subr.mxu0 0.0
        %1281 = vmatpush1.xpose.msra.mxu0 %v518
        %1282 = vmatprep.subr.mxu0 0.0
        %1283 = vmatpush1.xpose.msra.mxu0 %v515
        %1284 = vmatprep.subr.mxu0 0.0
        %1285 = vmatpush1.xpose.msra.mxu0 %v512
        %1286 = vmatprep.subr.mxu0 0.0
        %1287 = vmatpush1.xpose.msra.mxu0 %v509
        %1288 = vmatprep.subr.mxu0 0.0
        %1289 = vmatpush1.xpose.msra.mxu0 %v506
        %1290 = vmatprep.subr.mxu0 0.0
        %1291 = vmatpush1.xpose.msra.mxu0 %v503
        %1292 = vmatprep.subr.mxu0 0.0
        %1293 = vmatpush1.xpose.msra.mxu0 %v500
        %1294 = vmatprep.subr.mxu0 0.0
        %1295 = vmatpush1.xpose.msra.mxu0 %v497
        %1296 = vmatprep.subr.mxu0 0.0
        %1297 = vmatpush2.xpose.msra.mxu0 %v590
        %1298 = vmatprep.subr.mxu0 0.0
        %1299 = vmatpush2.xpose.msra.mxu0 %v587
        %1300 = vmatprep.subr.mxu0 0.0
        %1301 = vmatpush2.xpose.msra.mxu0 %v584
        %1302 = vmatprep.subr.mxu0 0.0
        %1303 = vmatpush2.xpose.msra.mxu0 %v581
        %1304 = vmatprep.subr.mxu0 0.0
        %1305 = vmatpush2.xpose.msra.mxu0 %v578
        %1306 = vmatprep.subr.mxu0 0.0
        %1307 = vmatpush2.xpose.msra.mxu0 %v575
        %1308 = vmatprep.subr.mxu0 0.0
        %1309 = vmatpush2.xpose.msra.mxu0 %v572
        %1310 = vmatprep.subr.mxu0 0.0
        %1311 = vmatpush2.xpose.msra.mxu0 %v569
        %1312 = vmatprep.subr.mxu0 0.0
        %1313 = vmatpush2.xpose.msra.mxu0 %v566
        %1314 = vmatprep.subr.mxu0 0.0
        %1315 = vmatpush2.xpose.msra.mxu0 %v563
        %1316 = vmatprep.subr.mxu0 0.0
        %1317 = vmatpush2.xpose.msra.mxu0 %v560
        %1318 = vmatprep.subr.mxu0 0.0
        %1319 = vmatpush2.xpose.msra.mxu0 %v557
        %1320 = vmatprep.subr.mxu0 0.0
        %1321 = vmatpush2.xpose.msra.mxu0 %v554
        %1322 = vmatprep.subr.mxu0 0.0
        %1323 = vmatpush2.xpose.msra.mxu0 %v551
        %1324 = vmatprep.subr.mxu0 0.0
        %1325 = vmatpush2.xpose.msra.mxu0 %v548
        %1326 = vmatprep.subr.mxu0 0.0
        %1327 = vmatpush2.xpose.msra.mxu0 %v545
        %1328 = vmatprep.mubr.f32.mxu0 0.0
        %1329 = vmatmul.mubr.f32.gmra.mxu0 %v494
        %v1330 = vpop.f32.mrf.mxu0
        %v1331 = vadd.f32 0.0, %v1330
        %v1332 = vpop.f32.mrf.mxu0
        %v1333 = vadd.f32 0.0, %v1332
        %1334 = vdwg.mxu0
        %1335 = vmatprep.subr.mxu0 0.0
        %1336 = vmatpush1.xpose.msra.mxu0 %v638
        %1337 = vmatprep.subr.mxu0 0.0
        %1338 = vmatpush1.xpose.msra.mxu0 %v635
        %1339 = vmatprep.subr.mxu0 0.0
        %1340 = vmatpush1.xpose.msra.mxu0 %v632
        %1341 = vmatprep.subr.mxu0 0.0
        %1342 = vmatpush1.xpose.msra.mxu0 %v629
        %1343 = vmatprep.subr.mxu0 0.0
        %1344 = vmatpush1.xpose.msra.mxu0 %v626
        %1345 = vmatprep.subr.mxu0 0.0
        %1346 = vmatpush1.xpose.msra.mxu0 %v623
        %1347 = vmatprep.subr.mxu0 0.0
        %1348 = vmatpush1.xpose.msra.mxu0 %v620
        %1349 = vmatprep.subr.mxu0 0.0
        %1350 = vmatpush1.xpose.msra.mxu0 %v617
        %1351 = vmatprep.subr.mxu0 0.0
        %1352 = vmatpush1.xpose.msra.mxu0 %v614
        %1353 = vmatprep.subr.mxu0 0.0
        %1354 = vmatpush1.xpose.msra.mxu0 %v611
        %1355 = vmatprep.subr.mxu0 0.0
        %1356 = vmatpush1.xpose.msra.mxu0 %v608
        %1357 = vmatprep.subr.mxu0 0.0
        %1358 = vmatpush1.xpose.msra.mxu0 %v605
        %1359 = vmatprep.subr.mxu0 0.0
        %1360 = vmatpush1.xpose.msra.mxu0 %v602
        %1361 = vmatprep.subr.mxu0 0.0
        %1362 = vmatpush1.xpose.msra.mxu0 %v599
        %1363 = vmatprep.subr.mxu0 0.0
        %1364 = vmatpush1.xpose.msra.mxu0 %v596
        %1365 = vmatprep.subr.mxu0 0.0
        %1366 = vmatpush1.xpose.msra.mxu0 %v593
        %1367 = vmatprep.subr.mxu0 0.0
        %1368 = vmatpush2.xpose.msra.mxu0 %v686
        %1369 = vmatprep.subr.mxu0 0.0
        %1370 = vmatpush2.xpose.msra.mxu0 %v683
        %1371 = vmatprep.subr.mxu0 0.0
        %1372 = vmatpush2.xpose.msra.mxu0 %v680
        %1373 = vmatprep.subr.mxu0 0.0
        %1374 = vmatpush2.xpose.msra.mxu0 %v677
        %1375 = vmatprep.subr.mxu0 0.0
        %1376 = vmatpush2.xpose.msra.mxu0 %v674
        %1377 = vmatprep.subr.mxu0 0.0
        %1378 = vmatpush2.xpose.msra.mxu0 %v671
        %1379 = vmatprep.subr.mxu0 0.0
        %1380 = vmatpush2.xpose.msra.mxu0 %v668
        %1381 = vmatprep.subr.mxu0 0.0
        %1382 = vmatpush2.xpose.msra.mxu0 %v665
        %1383 = vmatprep.subr.mxu0 0.0
        %1384 = vmatpush2.xpose.msra.mxu0 %v662
        %1385 = vmatprep.subr.mxu0 0.0
        %1386 = vmatpush2.xpose.msra.mxu0 %v659
        %1387 = vmatprep.subr.mxu0 0.0
        %1388 = vmatpush2.xpose.msra.mxu0 %v656
        %1389 = vmatprep.subr.mxu0 0.0
        %1390 = vmatpush2.xpose.msra.mxu0 %v653
        %1391 = vmatprep.subr.mxu0 0.0
        %1392 = vmatpush2.xpose.msra.mxu0 %v650
        %1393 = vmatprep.subr.mxu0 0.0
        %1394 = vmatpush2.xpose.msra.mxu0 %v647
        %1395 = vmatprep.subr.mxu0 0.0
        %1396 = vmatpush2.xpose.msra.mxu0 %v644
        %1397 = vmatprep.subr.mxu0 0.0
        %1398 = vmatpush2.xpose.msra.mxu0 %v641
        %1399 = vmatprep.mubr.f32.mxu0 0.0
        %1400 = vmatmul.mubr.f32.gmra.mxu0 %v494
        %v1401 = vpop.f32.mrf.mxu0
        %v1402 = vadd.f32 0.0, %v1401
        %v1403 = vpop.f32.mrf.mxu0
        %v1404 = vadd.f32 0.0, %v1403
        %1405 = vdwg.mxu0
        %1406 = vmatprep.subr.mxu0 0.0
        %1407 = vmatpush1.xpose.msra.mxu0 %v734
        %1408 = vmatprep.subr.mxu0 0.0
        %1409 = vmatpush1.xpose.msra.mxu0 %v731
        %1410 = vmatprep.subr.mxu0 0.0
        %1411 = vmatpush1.xpose.msra.mxu0 %v728
        %1412 = vmatprep.subr.mxu0 0.0
        %1413 = vmatpush1.xpose.msra.mxu0 %v725
        %1414 = vmatprep.subr.mxu0 0.0
        %1415 = vmatpush1.xpose.msra.mxu0 %v722
        %1416 = vmatprep.subr.mxu0 0.0
        %1417 = vmatpush1.xpose.msra.mxu0 %v719
        %1418 = vmatprep.subr.mxu0 0.0
        %1419 = vmatpush1.xpose.msra.mxu0 %v716
        %1420 = vmatprep.subr.mxu0 0.0
        %1421 = vmatpush1.xpose.msra.mxu0 %v713
        %1422 = vmatprep.subr.mxu0 0.0
        %1423 = vmatpush1.xpose.msra.mxu0 %v710
        %1424 = vmatprep.subr.mxu0 0.0
        %1425 = vmatpush1.xpose.msra.mxu0 %v707
        %1426 = vmatprep.subr.mxu0 0.0
        %1427 = vmatpush1.xpose.msra.mxu0 %v704
        %1428 = vmatprep.subr.mxu0 0.0
        %1429 = vmatpush1.xpose.msra.mxu0 %v701
        %1430 = vmatprep.subr.mxu0 0.0
        %1431 = vmatpush1.xpose.msra.mxu0 %v698
        %1432 = vmatprep.subr.mxu0 0.0
        %1433 = vmatpush1.xpose.msra.mxu0 %v695
        %1434 = vmatprep.subr.mxu0 0.0
        %1435 = vmatpush1.xpose.msra.mxu0 %v692
        %1436 = vmatprep.subr.mxu0 0.0
        %1437 = vmatpush1.xpose.msra.mxu0 %v689
        %1438 = vmatprep.subr.mxu0 0.0
        %1439 = vmatpush2.xpose.msra.mxu0 %v782
        %1440 = vmatprep.subr.mxu0 0.0
        %1441 = vmatpush2.xpose.msra.mxu0 %v779
        %1442 = vmatprep.subr.mxu0 0.0
        %1443 = vmatpush2.xpose.msra.mxu0 %v776
        %1444 = vmatprep.subr.mxu0 0.0
        %1445 = vmatpush2.xpose.msra.mxu0 %v773
        %1446 = vmatprep.subr.mxu0 0.0
        %1447 = vmatpush2.xpose.msra.mxu0 %v770
        %1448 = vmatprep.subr.mxu0 0.0
        %1449 = vmatpush2.xpose.msra.mxu0 %v767
        %1450 = vmatprep.subr.mxu0 0.0
        %1451 = vmatpush2.xpose.msra.mxu0 %v764
        %1452 = vmatprep.subr.mxu0 0.0
        %1453 = vmatpush2.xpose.msra.mxu0 %v761
        %1454 = vmatprep.subr.mxu0 0.0
        %1455 = vmatpush2.xpose.msra.mxu0 %v758
        %1456 = vmatprep.subr.mxu0 0.0
        %1457 = vmatpush2.xpose.msra.mxu0 %v755
        %1458 = vmatprep.subr.mxu0 0.0
        %1459 = vmatpush2.xpose.msra.mxu0 %v752
        %1460 = vmatprep.subr.mxu0 0.0
        %1461 = vmatpush2.xpose.msra.mxu0 %v749
        %1462 = vmatprep.subr.mxu0 0.0
        %1463 = vmatpush2.xpose.msra.mxu0 %v746
        %1464 = vmatprep.subr.mxu0 0.0
        %1465 = vmatpush2.xpose.msra.mxu0 %v743
        %1466 = vmatprep.subr.mxu0 0.0
        %1467 = vmatpush2.xpose.msra.mxu0 %v740
        %1468 = vmatprep.subr.mxu0 0.0
        %1469 = vmatpush2.xpose.msra.mxu0 %v737
        %1470 = vmatprep.mubr.f32.mxu0 0.0
        %1471 = vmatmul.mubr.f32.gmra.mxu0 %v494
        %v1472 = vpop.f32.mrf.mxu0
        %v1473 = vadd.f32 0.0, %v1472
        %v1474 = vpop.f32.mrf.mxu0
        %v1475 = vadd.f32 0.0, %v1474
        %1476 = vdwg.mxu0
        %1477 = vmatprep.subr.mxu0 0.0
        %1478 = vmatpush1.xpose.msra.mxu0 %v830
        %1479 = vmatprep.subr.mxu0 0.0
        %1480 = vmatpush1.xpose.msra.mxu0 %v827
        %1481 = vmatprep.subr.mxu0 0.0
        %1482 = vmatpush1.xpose.msra.mxu0 %v824
        %1483 = vmatprep.subr.mxu0 0.0
        %1484 = vmatpush1.xpose.msra.mxu0 %v821
        %1485 = vmatprep.subr.mxu0 0.0
        %1486 = vmatpush1.xpose.msra.mxu0 %v818
        %1487 = vmatprep.subr.mxu0 0.0
        %1488 = vmatpush1.xpose.msra.mxu0 %v815
        %1489 = vmatprep.subr.mxu0 0.0
        %1490 = vmatpush1.xpose.msra.mxu0 %v812
        %1491 = vmatprep.subr.mxu0 0.0
        %1492 = vmatpush1.xpose.msra.mxu0 %v809
        %1493 = vmatprep.subr.mxu0 0.0
        %1494 = vmatpush1.xpose.msra.mxu0 %v806
        %1495 = vmatprep.subr.mxu0 0.0
        %1496 = vmatpush1.xpose.msra.mxu0 %v803
        %1497 = vmatprep.subr.mxu0 0.0
        %1498 = vmatpush1.xpose.msra.mxu0 %v800
        %1499 = vmatprep.subr.mxu0 0.0
        %1500 = vmatpush1.xpose.msra.mxu0 %v797
        %1501 = vmatprep.subr.mxu0 0.0
        %1502 = vmatpush1.xpose.msra.mxu0 %v794
        %1503 = vmatprep.subr.mxu0 0.0
        %1504 = vmatpush1.xpose.msra.mxu0 %v791
        %1505 = vmatprep.subr.mxu0 0.0
        %1506 = vmatpush1.xpose.msra.mxu0 %v788
        %1507 = vmatprep.subr.mxu0 0.0
        %1508 = vmatpush1.xpose.msra.mxu0 %v785
        %1509 = vmatprep.subr.mxu0 0.0
        %1510 = vmatpush2.xpose.msra.mxu0 %v878
        %1511 = vmatprep.subr.mxu0 0.0
        %1512 = vmatpush2.xpose.msra.mxu0 %v875
        %1513 = vmatprep.subr.mxu0 0.0
        %1514 = vmatpush2.xpose.msra.mxu0 %v872
        %1515 = vmatprep.subr.mxu0 0.0
        %1516 = vmatpush2.xpose.msra.mxu0 %v869
        %1517 = vmatprep.subr.mxu0 0.0
        %1518 = vmatpush2.xpose.msra.mxu0 %v866
        %1519 = vmatprep.subr.mxu0 0.0
        %1520 = vmatpush2.xpose.msra.mxu0 %v863
        %1521 = vmatprep.subr.mxu0 0.0
        %1522 = vmatpush2.xpose.msra.mxu0 %v860
        %1523 = vmatprep.subr.mxu0 0.0
        %1524 = vmatpush2.xpose.msra.mxu0 %v857
        %1525 = vmatprep.subr.mxu0 0.0
        %1526 = vmatpush2.xpose.msra.mxu0 %v854
        %1527 = vmatprep.subr.mxu0 0.0
        %1528 = vmatpush2.xpose.msra.mxu0 %v851
        %1529 = vmatprep.subr.mxu0 0.0
        %1530 = vmatpush2.xpose.msra.mxu0 %v848
        %1531 = vmatprep.subr.mxu0 0.0
        %1532 = vmatpush2.xpose.msra.mxu0 %v845
        %1533 = vmatprep.subr.mxu0 0.0
        %1534 = vmatpush2.xpose.msra.mxu0 %v842
        %1535 = vmatprep.subr.mxu0 0.0
        %1536 = vmatpush2.xpose.msra.mxu0 %v839
        %1537 = vmatprep.subr.mxu0 0.0
        %1538 = vmatpush2.xpose.msra.mxu0 %v836
        %1539 = vmatprep.subr.mxu0 0.0
        %1540 = vmatpush2.xpose.msra.mxu0 %v833
        %1541 = vmatprep.mubr.f32.mxu0 0.0
        %1542 = vmatmul.mubr.f32.gmra.mxu0 %v494
        %v1543 = vpop.f32.mrf.mxu0
        %v1544 = vadd.f32 0.0, %v1543
        %v1545 = vpop.f32.mrf.mxu0
        %v1546 = vadd.f32 0.0, %v1545
        %1547 = vdwg.mxu0
        %1548 = vmatprep.subr.mxu0 0.0
        %1549 = vmatpush1.xpose.msra.mxu0 %v926
        %1550 = vmatprep.subr.mxu0 0.0
        %1551 = vmatpush1.xpose.msra.mxu0 %v923
        %1552 = vmatprep.subr.mxu0 0.0
        %1553 = vmatpush1.xpose.msra.mxu0 %v920
        %1554 = vmatprep.subr.mxu0 0.0
        %1555 = vmatpush1.xpose.msra.mxu0 %v917
        %1556 = vmatprep.subr.mxu0 0.0
        %1557 = vmatpush1.xpose.msra.mxu0 %v914
        %1558 = vmatprep.subr.mxu0 0.0
        %1559 = vmatpush1.xpose.msra.mxu0 %v911
        %1560 = vmatprep.subr.mxu0 0.0
        %1561 = vmatpush1.xpose.msra.mxu0 %v908
        %1562 = vmatprep.subr.mxu0 0.0
        %1563 = vmatpush1.xpose.msra.mxu0 %v905
        %1564 = vmatprep.subr.mxu0 0.0
        %1565 = vmatpush1.xpose.msra.mxu0 %v902
        %1566 = vmatprep.subr.mxu0 0.0
        %1567 = vmatpush1.xpose.msra.mxu0 %v899
        %1568 = vmatprep.subr.mxu0 0.0
        %1569 = vmatpush1.xpose.msra.mxu0 %v896
        %1570 = vmatprep.subr.mxu0 0.0
        %1571 = vmatpush1.xpose.msra.mxu0 %v893
        %1572 = vmatprep.subr.mxu0 0.0
        %1573 = vmatpush1.xpose.msra.mxu0 %v890
        %1574 = vmatprep.subr.mxu0 0.0
        %1575 = vmatpush1.xpose.msra.mxu0 %v887
        %1576 = vmatprep.subr.mxu0 0.0
        %1577 = vmatpush1.xpose.msra.mxu0 %v884
        %1578 = vmatprep.subr.mxu0 0.0
        %1579 = vmatpush1.xpose.msra.mxu0 %v881
        %1580 = vmatprep.subr.mxu0 0.0
        %1581 = vmatpush2.xpose.msra.mxu0 %v974
        %1582 = vmatprep.subr.mxu0 0.0
        %1583 = vmatpush2.xpose.msra.mxu0 %v971
        %1584 = vmatprep.subr.mxu0 0.0
        %1585 = vmatpush2.xpose.msra.mxu0 %v968
        %1586 = vmatprep.subr.mxu0 0.0
        %1587 = vmatpush2.xpose.msra.mxu0 %v965
        %1588 = vmatprep.subr.mxu0 0.0
        %1589 = vmatpush2.xpose.msra.mxu0 %v962
        %1590 = vmatprep.subr.mxu0 0.0
        %1591 = vmatpush2.xpose.msra.mxu0 %v959
        %1592 = vmatprep.subr.mxu0 0.0
        %1593 = vmatpush2.xpose.msra.mxu0 %v956
        %1594 = vmatprep.subr.mxu0 0.0
        %1595 = vmatpush2.xpose.msra.mxu0 %v953
        %1596 = vmatprep.subr.mxu0 0.0
        %1597 = vmatpush2.xpose.msra.mxu0 %v950
        %1598 = vmatprep.subr.mxu0 0.0
        %1599 = vmatpush2.xpose.msra.mxu0 %v947
        %1600 = vmatprep.subr.mxu0 0.0
        %1601 = vmatpush2.xpose.msra.mxu0 %v944
        %1602 = vmatprep.subr.mxu0 0.0
        %1603 = vmatpush2.xpose.msra.mxu0 %v941
        %1604 = vmatprep.subr.mxu0 0.0
        %1605 = vmatpush2.xpose.msra.mxu0 %v938
        %1606 = vmatprep.subr.mxu0 0.0
        %1607 = vmatpush2.xpose.msra.mxu0 %v935
        %1608 = vmatprep.subr.mxu0 0.0
        %1609 = vmatpush2.xpose.msra.mxu0 %v932
        %1610 = vmatprep.subr.mxu0 0.0
        %1611 = vmatpush2.xpose.msra.mxu0 %v929
        %1612 = vmatprep.mubr.f32.mxu0 0.0
        %1613 = vmatmul.mubr.f32.gmra.mxu0 %v494
        %v1614 = vpop.f32.mrf.mxu0
        %v1615 = vadd.f32 0.0, %v1614
        %v1616 = vpop.f32.mrf.mxu0
        %v1617 = vadd.f32 0.0, %v1616
        %1618 = vdwg.mxu0
        %1619 = vmatprep.subr.mxu0 0.0
        %1620 = vmatpush1.xpose.msra.mxu0 %v1022
        %1621 = vmatprep.subr.mxu0 0.0
        %1622 = vmatpush1.xpose.msra.mxu0 %v1019
        %1623 = vmatprep.subr.mxu0 0.0
        %1624 = vmatpush1.xpose.msra.mxu0 %v1016
        %1625 = vmatprep.subr.mxu0 0.0
        %1626 = vmatpush1.xpose.msra.mxu0 %v1013
        %1627 = vmatprep.subr.mxu0 0.0
        %1628 = vmatpush1.xpose.msra.mxu0 %v1010
        %1629 = vmatprep.subr.mxu0 0.0
        %1630 = vmatpush1.xpose.msra.mxu0 %v1007
        %1631 = vmatprep.subr.mxu0 0.0
        %1632 = vmatpush1.xpose.msra.mxu0 %v1004
        %1633 = vmatprep.subr.mxu0 0.0
        %1634 = vmatpush1.xpose.msra.mxu0 %v1001
        %1635 = vmatprep.subr.mxu0 0.0
        %1636 = vmatpush1.xpose.msra.mxu0 %v998
        %1637 = vmatprep.subr.mxu0 0.0
        %1638 = vmatpush1.xpose.msra.mxu0 %v995
        %1639 = vmatprep.subr.mxu0 0.0
        %1640 = vmatpush1.xpose.msra.mxu0 %v992
        %1641 = vmatprep.subr.mxu0 0.0
        %1642 = vmatpush1.xpose.msra.mxu0 %v989
        %1643 = vmatprep.subr.mxu0 0.0
        %1644 = vmatpush1.xpose.msra.mxu0 %v986
        %1645 = vmatprep.subr.mxu0 0.0
        %1646 = vmatpush1.xpose.msra.mxu0 %v983
        %1647 = vmatprep.subr.mxu0 0.0
        %1648 = vmatpush1.xpose.msra.mxu0 %v980
        %1649 = vmatprep.subr.mxu0 0.0
        %1650 = vmatpush1.xpose.msra.mxu0 %v977
        %1651 = vmatprep.subr.mxu0 0.0
        %1652 = vmatpush2.xpose.msra.mxu0 %v1070
        %1653 = vmatprep.subr.mxu0 0.0
        %1654 = vmatpush2.xpose.msra.mxu0 %v1067
        %1655 = vmatprep.subr.mxu0 0.0
        %1656 = vmatpush2.xpose.msra.mxu0 %v1064
        %1657 = vmatprep.subr.mxu0 0.0
        %1658 = vmatpush2.xpose.msra.mxu0 %v1061
        %1659 = vmatprep.subr.mxu0 0.0
        %1660 = vmatpush2.xpose.msra.mxu0 %v1058
        %1661 = vmatprep.subr.mxu0 0.0
        %1662 = vmatpush2.xpose.msra.mxu0 %v1055
        %1663 = vmatprep.subr.mxu0 0.0
        %1664 = vmatpush2.xpose.msra.mxu0 %v1052
        %1665 = vmatprep.subr.mxu0 0.0
        %1666 = vmatpush2.xpose.msra.mxu0 %v1049
        %1667 = vmatprep.subr.mxu0 0.0
        %1668 = vmatpush2.xpose.msra.mxu0 %v1046
        %1669 = vmatprep.subr.mxu0 0.0
        %1670 = vmatpush2.xpose.msra.mxu0 %v1043
        %1671 = vmatprep.subr.mxu0 0.0
        %1672 = vmatpush2.xpose.msra.mxu0 %v1040
        %1673 = vmatprep.subr.mxu0 0.0
        %1674 = vmatpush2.xpose.msra.mxu0 %v1037
        %1675 = vmatprep.subr.mxu0 0.0
        %1676 = vmatpush2.xpose.msra.mxu0 %v1034
        %1677 = vmatprep.subr.mxu0 0.0
        %1678 = vmatpush2.xpose.msra.mxu0 %v1031
        %1679 = vmatprep.subr.mxu0 0.0
        %1680 = vmatpush2.xpose.msra.mxu0 %v1028
        %1681 = vmatprep.subr.mxu0 0.0
        %1682 = vmatpush2.xpose.msra.mxu0 %v1025
        %1683 = vmatprep.mubr.f32.mxu0 0.0
        %1684 = vmatmul.mubr.f32.gmra.mxu0 %v494
        %v1685 = vpop.f32.mrf.mxu0
        %v1686 = vadd.f32 0.0, %v1685
        %v1687 = vpop.f32.mrf.mxu0
        %v1688 = vadd.f32 0.0, %v1687
        %1689 = vdwg.mxu0
        %1690 = vmatprep.subr.mxu0 0.0
        %1691 = vmatpush1.xpose.msra.mxu0 %v1118
        %1692 = vmatprep.subr.mxu0 0.0
        %1693 = vmatpush1.xpose.msra.mxu0 %v1115
        %1694 = vmatprep.subr.mxu0 0.0
        %1695 = vmatpush1.xpose.msra.mxu0 %v1112
        %1696 = vmatprep.subr.mxu0 0.0
        %1697 = vmatpush1.xpose.msra.mxu0 %v1109
        %1698 = vmatprep.subr.mxu0 0.0
        %1699 = vmatpush1.xpose.msra.mxu0 %v1106
        %1700 = vmatprep.subr.mxu0 0.0
        %1701 = vmatpush1.xpose.msra.mxu0 %v1103
        %1702 = vmatprep.subr.mxu0 0.0
        %1703 = vmatpush1.xpose.msra.mxu0 %v1100
        %1704 = vmatprep.subr.mxu0 0.0
        %1705 = vmatpush1.xpose.msra.mxu0 %v1097
        %1706 = vmatprep.subr.mxu0 0.0
        %1707 = vmatpush1.xpose.msra.mxu0 %v1094
        %1708 = vmatprep.subr.mxu0 0.0
        %1709 = vmatpush1.xpose.msra.mxu0 %v1091
        %1710 = vmatprep.subr.mxu0 0.0
        %1711 = vmatpush1.xpose.msra.mxu0 %v1088
        %1712 = vmatprep.subr.mxu0 0.0
        %1713 = vmatpush1.xpose.msra.mxu0 %v1085
        %1714 = vmatprep.subr.mxu0 0.0
        %1715 = vmatpush1.xpose.msra.mxu0 %v1082
        %1716 = vmatprep.subr.mxu0 0.0
        %1717 = vmatpush1.xpose.msra.mxu0 %v1079
        %1718 = vmatprep.subr.mxu0 0.0
        %1719 = vmatpush1.xpose.msra.mxu0 %v1076
        %1720 = vmatprep.subr.mxu0 0.0
        %1721 = vmatpush1.xpose.msra.mxu0 %v1073
        %1722 = vmatprep.subr.mxu0 0.0
        %1723 = vmatpush2.xpose.msra.mxu0 %v1166
        %1724 = vmatprep.subr.mxu0 0.0
        %1725 = vmatpush2.xpose.msra.mxu0 %v1163
        %1726 = vmatprep.subr.mxu0 0.0
        %1727 = vmatpush2.xpose.msra.mxu0 %v1160
        %1728 = vmatprep.subr.mxu0 0.0
        %1729 = vmatpush2.xpose.msra.mxu0 %v1157
        %1730 = vmatprep.subr.mxu0 0.0
        %1731 = vmatpush2.xpose.msra.mxu0 %v1154
        %1732 = vmatprep.subr.mxu0 0.0
        %1733 = vmatpush2.xpose.msra.mxu0 %v1151
        %1734 = vmatprep.subr.mxu0 0.0
        %1735 = vmatpush2.xpose.msra.mxu0 %v1148
        %1736 = vmatprep.subr.mxu0 0.0
        %1737 = vmatpush2.xpose.msra.mxu0 %v1145
        %1738 = vmatprep.subr.mxu0 0.0
        %1739 = vmatpush2.xpose.msra.mxu0 %v1142
        %1740 = vmatprep.subr.mxu0 0.0
        %1741 = vmatpush2.xpose.msra.mxu0 %v1139
        %1742 = vmatprep.subr.mxu0 0.0
        %1743 = vmatpush2.xpose.msra.mxu0 %v1136
        %1744 = vmatprep.subr.mxu0 0.0
        %1745 = vmatpush2.xpose.msra.mxu0 %v1133
        %1746 = vmatprep.subr.mxu0 0.0
        %1747 = vmatpush2.xpose.msra.mxu0 %v1130
        %1748 = vmatprep.subr.mxu0 0.0
        %1749 = vmatpush2.xpose.msra.mxu0 %v1127
        %1750 = vmatprep.subr.mxu0 0.0
        %1751 = vmatpush2.xpose.msra.mxu0 %v1124
        %1752 = vmatprep.subr.mxu0 0.0
        %1753 = vmatpush2.xpose.msra.mxu0 %v1121
        %1754 = vmatprep.mubr.f32.mxu0 0.0
        %1755 = vmatmul.mubr.f32.gmra.mxu0 %v494
        %v1756 = vpop.f32.mrf.mxu0
        %v1757 = vadd.f32 0.0, %v1756
        %v1758 = vpop.f32.mrf.mxu0
        %v1759 = vadd.f32 0.0, %v1758
        %1760 = vdwg.mxu0
        %1761 = vmatprep.subr.mxu0 0.0
        %1762 = vmatpush1.xpose.msra.mxu0 %v1214
        %1763 = vmatprep.subr.mxu0 0.0
        %1764 = vmatpush1.xpose.msra.mxu0 %v1211
        %1765 = vmatprep.subr.mxu0 0.0
        %1766 = vmatpush1.xpose.msra.mxu0 %v1208
        %1767 = vmatprep.subr.mxu0 0.0
        %1768 = vmatpush1.xpose.msra.mxu0 %v1205
        %1769 = vmatprep.subr.mxu0 0.0
        %1770 = vmatpush1.xpose.msra.mxu0 %v1202
        %1771 = vmatprep.subr.mxu0 0.0
        %1772 = vmatpush1.xpose.msra.mxu0 %v1199
        %1773 = vmatprep.subr.mxu0 0.0
        %1774 = vmatpush1.xpose.msra.mxu0 %v1196
        %1775 = vmatprep.subr.mxu0 0.0
        %1776 = vmatpush1.xpose.msra.mxu0 %v1193
        %1777 = vmatprep.subr.mxu0 0.0
        %1778 = vmatpush1.xpose.msra.mxu0 %v1190
        %1779 = vmatprep.subr.mxu0 0.0
        %1780 = vmatpush1.xpose.msra.mxu0 %v1187
        %1781 = vmatprep.subr.mxu0 0.0
        %1782 = vmatpush1.xpose.msra.mxu0 %v1184
        %1783 = vmatprep.subr.mxu0 0.0
        %1784 = vmatpush1.xpose.msra.mxu0 %v1181
        %1785 = vmatprep.subr.mxu0 0.0
        %1786 = vmatpush1.xpose.msra.mxu0 %v1178
        %1787 = vmatprep.subr.mxu0 0.0
        %1788 = vmatpush1.xpose.msra.mxu0 %v1175
        %1789 = vmatprep.subr.mxu0 0.0
        %1790 = vmatpush1.xpose.msra.mxu0 %v1172
        %1791 = vmatprep.subr.mxu0 0.0
        %1792 = vmatpush1.xpose.msra.mxu0 %v1169
        %1793 = vmatprep.subr.mxu0 0.0
        %1794 = vmatpush2.xpose.msra.mxu0 %v1262
        %1795 = vmatprep.subr.mxu0 0.0
        %1796 = vmatpush2.xpose.msra.mxu0 %v1259
        %1797 = vmatprep.subr.mxu0 0.0
        %1798 = vmatpush2.xpose.msra.mxu0 %v1256
        %1799 = vmatprep.subr.mxu0 0.0
        %1800 = vmatpush2.xpose.msra.mxu0 %v1253
        %1801 = vmatprep.subr.mxu0 0.0
        %1802 = vmatpush2.xpose.msra.mxu0 %v1250
        %1803 = vmatprep.subr.mxu0 0.0
        %1804 = vmatpush2.xpose.msra.mxu0 %v1247
        %1805 = vmatprep.subr.mxu0 0.0
        %1806 = vmatpush2.xpose.msra.mxu0 %v1244
        %1807 = vmatprep.subr.mxu0 0.0
        %1808 = vmatpush2.xpose.msra.mxu0 %v1241
        %1809 = vmatprep.subr.mxu0 0.0
        %1810 = vmatpush2.xpose.msra.mxu0 %v1238
        %1811 = vmatprep.subr.mxu0 0.0
        %1812 = vmatpush2.xpose.msra.mxu0 %v1235
        %1813 = vmatprep.subr.mxu0 0.0
        %1814 = vmatpush2.xpose.msra.mxu0 %v1232
        %1815 = vmatprep.subr.mxu0 0.0
        %1816 = vmatpush2.xpose.msra.mxu0 %v1229
        %1817 = vmatprep.subr.mxu0 0.0
        %1818 = vmatpush2.xpose.msra.mxu0 %v1226
        %1819 = vmatprep.subr.mxu0 0.0
        %1820 = vmatpush2.xpose.msra.mxu0 %v1223
        %1821 = vmatprep.subr.mxu0 0.0
        %1822 = vmatpush2.xpose.msra.mxu0 %v1220
        %1823 = vmatprep.subr.mxu0 0.0
        %1824 = vmatpush2.xpose.msra.mxu0 %v1217
        %1825 = vmatprep.mubr.f32.mxu0 0.0
        %1826 = vmatmul.mubr.f32.gmra.mxu0 %v494
        %v1827 = vpop.f32.mrf.mxu0
        %v1828 = vadd.f32 0.0, %v1827
        %v1829 = vpop.f32.mrf.mxu0
        %v1830 = vadd.f32 0.0, %v1829
        %1831 = vdwg.mxu0
        %v1832 = vld [vmem:[%s225] sm:$0xff]
        %v1833 = vld [vmem:[%s225 + $0x8] sm:$0xff]
        %v1834 = vstv %s232
        %v1835 = vadd.f32 %v1331, %v1834
        %v1836 = vadd.f32 %v1333, %v1834
        %v1837 = vadd.f32 %v1402, %v1834
        %v1838 = vadd.f32 %v1404, %v1834
        %v1839 = vadd.f32 %v1473, %v1834
        %v1840 = vadd.f32 %v1475, %v1834
        %v1841 = vadd.f32 %v1544, %v1834
        %v1842 = vadd.f32 %v1546, %v1834
        %v1843 = vadd.f32 %v1615, %v1834
        %v1844 = vadd.f32 %v1617, %v1834
        %v1845 = vadd.f32 %v1686, %v1834
        %v1846 = vadd.f32 %v1688, %v1834
        %v1847 = vadd.f32 %v1757, %v1834
        %v1848 = vadd.f32 %v1759, %v1834
        %v1849 = vadd.f32 %v1828, %v1834
        %v1850 = vadd.f32 %v1830, %v1834
        %v1851 = vand.u32 2147483647, %v1835
        %v1852 = vand.u32 2147483647, %v1836
        %v1853 = vand.u32 2147483647, %v1837
        %v1854 = vand.u32 2147483647, %v1838
        %v1855 = vand.u32 2147483647, %v1839
        %v1856 = vand.u32 2147483647, %v1840
        %v1857 = vand.u32 2147483647, %v1841
        %v1858 = vand.u32 2147483647, %v1842
        %v1859 = vand.u32 2147483647, %v1843
        %v1860 = vand.u32 2147483647, %v1844
        %v1861 = vand.u32 2147483647, %v1845
        %v1862 = vand.u32 2147483647, %v1846
        %v1863 = vand.u32 2147483647, %v1847
        %v1864 = vand.u32 2147483647, %v1848
        %v1865 = vand.u32 2147483647, %v1849
        %v1866 = vand.u32 2147483647, %v1850
        %v1867 = vsub.f32 0.0, %v1851
        %v1868 = vsub.f32 0.0, %v1852
        %v1869 = vsub.f32 0.0, %v1853
        %v1870 = vsub.f32 0.0, %v1854
        %v1871 = vsub.f32 0.0, %v1855
        %v1872 = vsub.f32 0.0, %v1856
        %v1873 = vsub.f32 0.0, %v1857
        %v1874 = vsub.f32 0.0, %v1858
        %v1875 = vsub.f32 0.0, %v1859
        %v1876 = vsub.f32 0.0, %v1860
        %v1877 = vsub.f32 0.0, %v1861
        %v1878 = vsub.f32 0.0, %v1862
        %v1879 = vsub.f32 0.0, %v1863
        %v1880 = vsub.f32 0.0, %v1864
        %v1881 = vsub.f32 0.0, %v1865
        %v1882 = vsub.f32 0.0, %v1866
        %v1883 = vmul.f32 %v1867, 1.442695
        %v1884 = vpow.pop %v1883
        %v1885 = vmul.f32 %v1868, 1.442695
        %v1886 = vpow.pop %v1885
        %v1887 = vmul.f32 %v1869, 1.442695
        %v1888 = vpow.pop %v1887
        %v1889 = vmul.f32 %v1870, 1.442695
        %v1890 = vpow.pop %v1889
        %v1891 = vmul.f32 %v1871, 1.442695
        %v1892 = vpow.pop %v1891
        %v1893 = vmul.f32 %v1872, 1.442695
        %v1894 = vpow.pop %v1893
        %v1895 = vmul.f32 %v1873, 1.442695
        %v1896 = vpow.pop %v1895
        %v1897 = vmul.f32 %v1874, 1.442695
        %v1898 = vpow.pop %v1897
        %v1899 = vmul.f32 %v1875, 1.442695
        %v1900 = vpow.pop %v1899
        %v1901 = vmul.f32 %v1876, 1.442695
        %v1902 = vpow.pop %v1901
        %v1903 = vmul.f32 %v1877, 1.442695
        %v1904 = vpow.pop %v1903
        %v1905 = vmul.f32 %v1878, 1.442695
        %v1906 = vpow.pop %v1905
        %v1907 = vmul.f32 %v1879, 1.442695
        %v1908 = vpow.pop %v1907
        %v1909 = vmul.f32 %v1880, 1.442695
        %v1910 = vpow.pop %v1909
        %v1911 = vmul.f32 %v1881, 1.442695
        %v1912 = vpow.pop %v1911
        %v1913 = vmul.f32 %v1882, 1.442695
        %v1914 = vpow.pop %v1913
        %v1915 = vadd.f32 %v1884, 1.0
        %v1916 = vadd.f32 %v1886, 1.0
        %v1917 = vadd.f32 %v1888, 1.0
        %v1918 = vadd.f32 %v1890, 1.0
        %v1919 = vadd.f32 %v1892, 1.0
        %v1920 = vadd.f32 %v1894, 1.0
        %v1921 = vadd.f32 %v1896, 1.0
        %v1922 = vadd.f32 %v1898, 1.0
        %v1923 = vadd.f32 %v1900, 1.0
        %v1924 = vadd.f32 %v1902, 1.0
        %v1925 = vadd.f32 %v1904, 1.0
        %v1926 = vadd.f32 %v1906, 1.0
        %v1927 = vadd.f32 %v1908, 1.0
        %v1928 = vadd.f32 %v1910, 1.0
        %v1929 = vadd.f32 %v1912, 1.0
        %v1930 = vadd.f32 %v1914, 1.0
        %v1931 = vlog2.pop %v1915
        %v1932 = vmul.f32 %v1931, 0.6931472
        %v1933 = vlog2.pop %v1916
        %v1934 = vmul.f32 %v1933, 0.6931472
        %v1935 = vlog2.pop %v1917
        %v1936 = vmul.f32 %v1935, 0.6931472
        %v1937 = vlog2.pop %v1918
        %v1938 = vmul.f32 %v1937, 0.6931472
        %v1939 = vlog2.pop %v1919
        %v1940 = vmul.f32 %v1939, 0.6931472
        %v1941 = vlog2.pop %v1920
        %v1942 = vmul.f32 %v1941, 0.6931472
        %v1943 = vlog2.pop %v1921
        %v1944 = vmul.f32 %v1943, 0.6931472
        %v1945 = vlog2.pop %v1922
        %v1946 = vmul.f32 %v1945, 0.6931472
        %v1947 = vlog2.pop %v1923
        %v1948 = vmul.f32 %v1947, 0.6931472
        %v1949 = vlog2.pop %v1924
        %v1950 = vmul.f32 %v1949, 0.6931472
        %v1951 = vlog2.pop %v1925
        %v1952 = vmul.f32 %v1951, 0.6931472
        %v1953 = vlog2.pop %v1926
        %v1954 = vmul.f32 %v1953, 0.6931472
        %v1955 = vlog2.pop %v1927
        %v1956 = vmul.f32 %v1955, 0.6931472
        %v1957 = vlog2.pop %v1928
        %v1958 = vmul.f32 %v1957, 0.6931472
        %v1959 = vlog2.pop %v1929
        %v1960 = vmul.f32 %v1959, 0.6931472
        %v1961 = vlog2.pop %v1930
        %v1962 = vmul.f32 %v1961, 0.6931472
        %v1963 = vmax.f32 %v1835, 0.0
        %v1964 = vmax.f32 %v1836, 0.0
        %v1965 = vmax.f32 %v1837, 0.0
        %v1966 = vmax.f32 %v1838, 0.0
        %v1967 = vmax.f32 %v1839, 0.0
        %v1968 = vmax.f32 %v1840, 0.0
        %v1969 = vmax.f32 %v1841, 0.0
        %v1970 = vmax.f32 %v1842, 0.0
        %v1971 = vmax.f32 %v1843, 0.0
        %v1972 = vmax.f32 %v1844, 0.0
        %v1973 = vmax.f32 %v1845, 0.0
        %v1974 = vmax.f32 %v1846, 0.0
        %v1975 = vmax.f32 %v1847, 0.0
        %v1976 = vmax.f32 %v1848, 0.0
        %v1977 = vmax.f32 %v1849, 0.0
        %v1978 = vmax.f32 %v1850, 0.0
        %v1979 = vadd.f32 %v1963, %v1932
        %v1980 = vadd.f32 %v1964, %v1934
        %v1981 = vadd.f32 %v1965, %v1936
        %v1982 = vadd.f32 %v1966, %v1938
        %v1983 = vadd.f32 %v1967, %v1940
        %v1984 = vadd.f32 %v1968, %v1942
        %v1985 = vadd.f32 %v1969, %v1944
        %v1986 = vadd.f32 %v1970, %v1946
        %v1987 = vadd.f32 %v1971, %v1948
        %v1988 = vadd.f32 %v1972, %v1950
        %v1989 = vadd.f32 %v1973, %v1952
        %v1990 = vadd.f32 %v1974, %v1954
        %v1991 = vadd.f32 %v1975, %v1956
        %v1992 = vadd.f32 %v1976, %v1958
        %v1993 = vadd.f32 %v1977, %v1960
        %v1994 = vadd.f32 %v1978, %v1962
        %v1995 = vstv %s233
        %v1996 = vmul.f32 %v1995, %v1979
        %v1997 = vmul.f32 %v1995, %v1980
        %v1998 = vmul.f32 %v1995, %v1981
        %v1999 = vmul.f32 %v1995, %v1982
        %v2000 = vmul.f32 %v1995, %v1983
        %v2001 = vmul.f32 %v1995, %v1984
        %v2002 = vmul.f32 %v1995, %v1985
        %v2003 = vmul.f32 %v1995, %v1986
        %v2004 = vmul.f32 %v1995, %v1987
        %v2005 = vmul.f32 %v1995, %v1988
        %v2006 = vmul.f32 %v1995, %v1989
        %v2007 = vmul.f32 %v1995, %v1990
        %v2008 = vmul.f32 %v1995, %v1991
        %v2009 = vmul.f32 %v1995, %v1992
        %v2010 = vmul.f32 %v1995, %v1993
        %v2011 = vmul.f32 %v1995, %v1994
        %v2012 = vsub.f32 0.0, %v1835
        %v2013 = vsub.f32 0.0, %v1836
        %v2014 = vsub.f32 0.0, %v1837
        %v2015 = vsub.f32 0.0, %v1838
        %v2016 = vsub.f32 0.0, %v1839
        %v2017 = vsub.f32 0.0, %v1840
        %v2018 = vsub.f32 0.0, %v1841
        %v2019 = vsub.f32 0.0, %v1842
        %v2020 = vsub.f32 0.0, %v1843
        %v2021 = vsub.f32 0.0, %v1844
        %v2022 = vsub.f32 0.0, %v1845
        %v2023 = vsub.f32 0.0, %v1846
        %v2024 = vsub.f32 0.0, %v1847
        %v2025 = vsub.f32 0.0, %v1848
        %v2026 = vsub.f32 0.0, %v1849
        %v2027 = vsub.f32 0.0, %v1850
        %v2028 = vmax.f32 %v2012, 0.0
        %v2029 = vmax.f32 %v2013, 0.0
        %v2030 = vmax.f32 %v2014, 0.0
        %v2031 = vmax.f32 %v2015, 0.0
        %v2032 = vmax.f32 %v2016, 0.0
        %v2033 = vmax.f32 %v2017, 0.0
        %v2034 = vmax.f32 %v2018, 0.0
        %v2035 = vmax.f32 %v2019, 0.0
        %v2036 = vmax.f32 %v2020, 0.0
        %v2037 = vmax.f32 %v2021, 0.0
        %v2038 = vmax.f32 %v2022, 0.0
        %v2039 = vmax.f32 %v2023, 0.0
        %v2040 = vmax.f32 %v2024, 0.0
        %v2041 = vmax.f32 %v2025, 0.0
        %v2042 = vmax.f32 %v2026, 0.0
        %v2043 = vmax.f32 %v2027, 0.0
        %v2044 = vadd.f32 %v2028, %v1932
        %v2045 = vadd.f32 %v2029, %v1934
        %v2046 = vadd.f32 %v2030, %v1936
        %v2047 = vadd.f32 %v2031, %v1938
        %v2048 = vadd.f32 %v2032, %v1940
        %v2049 = vadd.f32 %v2033, %v1942
        %v2050 = vadd.f32 %v2034, %v1944
        %v2051 = vadd.f32 %v2035, %v1946
        %v2052 = vadd.f32 %v2036, %v1948
        %v2053 = vadd.f32 %v2037, %v1950
        %v2054 = vadd.f32 %v2038, %v1952
        %v2055 = vadd.f32 %v2039, %v1954
        %v2056 = vadd.f32 %v2040, %v1956
        %v2057 = vadd.f32 %v2041, %v1958
        %v2058 = vadd.f32 %v2042, %v1960
        %v2059 = vadd.f32 %v2043, %v1962
        %v2076 = vcombine.low %v2044, %v2045
        %v2077 = vcombine.low %v2046, %v2047
        %v2078 = vcombine.low %v2048, %v2049
        %v2079 = vcombine.low %v2050, %v2051
        %v2081 = vunpack.c.l.s4 1966171168
        %v2082 = vunpack.c.0.s8 %v2081
        %v2083 = vlaneseq
        %v2084 = vshrl.u32 %v2083, 7
        %v2085 = vsub.s32 %v2082, %v2084
        %v2086 = vrot.slane %v2076, %v2085
        %v2088 = vunpack.c.l.s4 1966171168
        %v2089 = vunpack.c.0.s8 %v2088
        %v2090 = vlaneseq
        %v2091 = vshrl.u32 %v2090, 7
        %v2092 = vsub.s32 %v2089, %v2091
        %v2093 = vrot.slane %v2077, %v2092
        %v2095 = vunpack.c.l.s4 1966171168
        %v2096 = vunpack.c.0.s8 %v2095
        %v2097 = vlaneseq
        %v2098 = vshrl.u32 %v2097, 7
        %v2099 = vsub.s32 %v2096, %v2098
        %v2100 = vrot.slane %v2078, %v2099
        %v2102 = vunpack.c.l.s4 1966171168
        %v2103 = vunpack.c.0.s8 %v2102
        %v2104 = vlaneseq
        %v2105 = vshrl.u32 %v2104, 7
        %v2106 = vsub.s32 %v2103, %v2105
        %v2107 = vrot.slane %v2079, %v2106
        %v2108 = vcombine.low %v2086, %v2093
        %v2109 = vcombine.low %v2100, %v2107
        %v2111 = vunpack.c.l.s4 1966171168
        %v2112 = vunpack.c.0.s8 %v2111
        %v2113 = vlaneseq
        %v2114 = vshrl.u32 %v2113, 7
        %v2115 = vsub.s32 %v2112, %v2114
        %v2116 = vrot.slane %v2108, %v2115
        %v2118 = vunpack.c.l.s4 1966171168
        %v2119 = vunpack.c.0.s8 %v2118
        %v2120 = vlaneseq
        %v2121 = vshrl.u32 %v2120, 7
        %v2122 = vsub.s32 %v2119, %v2121
        %v2123 = vrot.slane %v2109, %v2122
        %v2124 = vcombine.low %v2116, %v2123
        %v2125 = vcombine.low %v2052, %v2053
        %v2126 = vcombine.low %v2054, %v2055
        %v2127 = vcombine.low %v2056, %v2057
        %v2128 = vcombine.low %v2058, %v2059
        %v2130 = vunpack.c.l.s4 1966171168
        %v2131 = vunpack.c.0.s8 %v2130
        %v2132 = vlaneseq
        %v2133 = vshrl.u32 %v2132, 7
        %v2134 = vsub.s32 %v2131, %v2133
        %v2135 = vrot.slane %v2125, %v2134
        %v2137 = vunpack.c.l.s4 1966171168
        %v2138 = vunpack.c.0.s8 %v2137
        %v2139 = vlaneseq
        %v2140 = vshrl.u32 %v2139, 7
        %v2141 = vsub.s32 %v2138, %v2140
        %v2142 = vrot.slane %v2126, %v2141
        %v2144 = vunpack.c.l.s4 1966171168
        %v2145 = vunpack.c.0.s8 %v2144
        %v2146 = vlaneseq
        %v2147 = vshrl.u32 %v2146, 7
        %v2148 = vsub.s32 %v2145, %v2147
        %v2149 = vrot.slane %v2127, %v2148
        %v2151 = vunpack.c.l.s4 1966171168
        %v2152 = vunpack.c.0.s8 %v2151
        %v2153 = vlaneseq
        %v2154 = vshrl.u32 %v2153, 7
        %v2155 = vsub.s32 %v2152, %v2154
        %v2156 = vrot.slane %v2128, %v2155
        %v2157 = vcombine.low %v2135, %v2142
        %v2158 = vcombine.low %v2149, %v2156
        %v2160 = vunpack.c.l.s4 1966171168
        %v2161 = vunpack.c.0.s8 %v2160
        %v2162 = vlaneseq
        %v2163 = vshrl.u32 %v2162, 7
        %v2164 = vsub.s32 %v2161, %v2163
        %v2165 = vrot.slane %v2157, %v2164
        %v2167 = vunpack.c.l.s4 1966171168
        %v2168 = vunpack.c.0.s8 %v2167
        %v2169 = vlaneseq
        %v2170 = vshrl.u32 %v2169, 7
        %v2171 = vsub.s32 %v2168, %v2170
        %v2172 = vrot.slane %v2158, %v2171
        %v2173 = vcombine.low %v2165, %v2172
        %v2176 = vmul.f32 %v1832, %v2124
        %v2177 = vmul.f32 %v1833, %v2173
        %v2180 = vlaneseq
        %v2181 = vshrl.u32 %v2180, 7
        %v2182 = vsub.s32 0, %v2181
        %v2183 = vrot.slane %v2176, %v2182
        %v2184 = vlaneseq
        %v2185 = vshrl.u32 %v2184, 7
        %v2186 = vsub.s32 1, %v2185
        %v2187 = vrot.slane %v2176, %v2186
        %v2188 = vlaneseq
        %v2189 = vshrl.u32 %v2188, 7
        %v2190 = vsub.s32 2, %v2189
        %v2191 = vrot.slane %v2176, %v2190
        %v2192 = vlaneseq
        %v2193 = vshrl.u32 %v2192, 7
        %v2194 = vsub.s32 3, %v2193
        %v2195 = vrot.slane %v2176, %v2194
        %v2196 = vlaneseq
        %v2197 = vshrl.u32 %v2196, 7
        %v2198 = vsub.s32 4, %v2197
        %v2199 = vrot.slane %v2176, %v2198
        %v2200 = vlaneseq
        %v2201 = vshrl.u32 %v2200, 7
        %v2202 = vsub.s32 5, %v2201
        %v2203 = vrot.slane %v2176, %v2202
        %v2204 = vlaneseq
        %v2205 = vshrl.u32 %v2204, 7
        %v2206 = vsub.s32 6, %v2205
        %v2207 = vrot.slane %v2176, %v2206
        %v2208 = vlaneseq
        %v2209 = vshrl.u32 %v2208, 7
        %v2210 = vsub.s32 7, %v2209
        %v2211 = vrot.slane %v2176, %v2210
        %v2212 = vlaneseq
        %v2213 = vshrl.u32 %v2212, 7
        %v2214 = vsub.s32 0, %v2213
        %v2215 = vrot.slane %v2177, %v2214
        %v2216 = vlaneseq
        %v2217 = vshrl.u32 %v2216, 7
        %v2218 = vsub.s32 1, %v2217
        %v2219 = vrot.slane %v2177, %v2218
        %v2220 = vlaneseq
        %v2221 = vshrl.u32 %v2220, 7
        %v2222 = vsub.s32 2, %v2221
        %v2223 = vrot.slane %v2177, %v2222
        %v2224 = vlaneseq
        %v2225 = vshrl.u32 %v2224, 7
        %v2226 = vsub.s32 3, %v2225
        %v2227 = vrot.slane %v2177, %v2226
        %v2228 = vlaneseq
        %v2229 = vshrl.u32 %v2228, 7
        %v2230 = vsub.s32 4, %v2229
        %v2231 = vrot.slane %v2177, %v2230
        %v2232 = vlaneseq
        %v2233 = vshrl.u32 %v2232, 7
        %v2234 = vsub.s32 5, %v2233
        %v2235 = vrot.slane %v2177, %v2234
        %v2236 = vlaneseq
        %v2237 = vshrl.u32 %v2236, 7
        %v2238 = vsub.s32 6, %v2237
        %v2239 = vrot.slane %v2177, %v2238
        %v2240 = vlaneseq
        %v2241 = vshrl.u32 %v2240, 7
        %v2242 = vsub.s32 7, %v2241
        %v2243 = vrot.slane %v2177, %v2242
        %v2260 = vadd.f32 %v1996, %v2183
        %v2261 = vadd.f32 %v1997, %v2187
        %v2262 = vadd.f32 %v1998, %v2191
        %v2263 = vadd.f32 %v1999, %v2195
        %v2264 = vadd.f32 %v2000, %v2199
        %v2265 = vadd.f32 %v2001, %v2203
        %v2266 = vadd.f32 %v2002, %v2207
        %v2267 = vadd.f32 %v2003, %v2211
        %v2268 = vadd.f32 %v2004, %v2215
        %v2269 = vadd.f32 %v2005, %v2219
        %v2270 = vadd.f32 %v2006, %v2223
        %v2271 = vadd.f32 %v2007, %v2227
        %v2272 = vadd.f32 %v2008, %v2231
        %v2273 = vadd.f32 %v2009, %v2235
        %v2274 = vadd.f32 %v2010, %v2239
        %v2275 = vadd.f32 %v2011, %v2243
        %v2276 = vsub.f32 0.0, %v2260
        %v2277 = vsub.f32 0.0, %v2261
        %v2278 = vsub.f32 0.0, %v2262
        %v2279 = vsub.f32 0.0, %v2263
        %v2280 = vsub.f32 0.0, %v2264
        %v2281 = vsub.f32 0.0, %v2265
        %v2282 = vsub.f32 0.0, %v2266
        %v2283 = vsub.f32 0.0, %v2267
        %v2284 = vsub.f32 0.0, %v2268
        %v2285 = vsub.f32 0.0, %v2269
        %v2286 = vsub.f32 0.0, %v2270
        %v2287 = vsub.f32 0.0, %v2271
        %v2288 = vsub.f32 0.0, %v2272
        %v2289 = vsub.f32 0.0, %v2273
        %v2290 = vsub.f32 0.0, %v2274
        %v2291 = vsub.f32 0.0, %v2275
        %vm2292 = vcmp.ge.f32.partialorder %v1832, 1.0
        %vm2293 = vcmp.ge.f32.partialorder %v1833, 1.0
        %v2294 = vadd.f32 %v1832, %v1995
        %v2295 = vadd.f32 %v1833, %v1995
        %v2296 = vsub.f32 %v2294, 1.0
        %v2297 = vsub.f32 %v2295, 1.0
        %v2298 = vadd.f32 %v2296, 1.0
        %v2299 = vadd.f32 %v2297, 1.0
        %v2300 = vrcp.pop %v2298
        %v2301 = vmul.f32 676.5204, %v2300
        %v2302 = vrcp.pop %v2299
        %v2303 = vmul.f32 676.5204, %v2302
        %v2304 = vadd.f32 %v2301, 1.0
        %v2305 = vadd.f32 %v2303, 1.0
        %v2306 = vadd.f32 %v2296, 2.0
        %v2307 = vadd.f32 %v2297, 2.0
        %v2308 = vrcp.pop %v2306
        %v2309 = vmul.f32 -1259.1392, %v2308
        %v2310 = vrcp.pop %v2307
        %v2311 = vmul.f32 -1259.1392, %v2310
        %v2312 = vadd.f32 %v2304, %v2309
        %v2313 = vadd.f32 %v2305, %v2311
        %v2314 = vadd.f32 %v2296, 3.0
        %v2315 = vadd.f32 %v2297, 3.0
        %v2316 = vrcp.pop %v2314
        %v2317 = vmul.f32 771.3234, %v2316
        %v2318 = vrcp.pop %v2315
        %v2319 = vmul.f32 771.3234, %v2318
        %v2320 = vadd.f32 %v2312, %v2317
        %v2321 = vadd.f32 %v2313, %v2319
        %v2322 = vadd.f32 %v2296, 4.0
        %v2323 = vadd.f32 %v2297, 4.0
        %v2324 = vrcp.pop %v2322
        %v2325 = vmul.f32 -176.61504, %v2324
        %v2326 = vrcp.pop %v2323
        %v2327 = vmul.f32 -176.61504, %v2326
        %v2328 = vadd.f32 %v2320, %v2325
        %v2329 = vadd.f32 %v2321, %v2327
        %v2330 = vadd.f32 %v2296, 5.0
        %v2331 = vadd.f32 %v2297, 5.0
        %v2332 = vrcp.pop %v2330
        %v2333 = vmul.f32 12.507343, %v2332
        %v2334 = vrcp.pop %v2331
        %v2335 = vmul.f32 12.507343, %v2334
        %v2336 = vadd.f32 %v2328, %v2333
        %v2337 = vadd.f32 %v2329, %v2335
        %v2338 = vadd.f32 %v2296, 6.0
        %v2339 = vadd.f32 %v2297, 6.0
        %v2340 = vrcp.pop %v2338
        %v2341 = vmul.f32 -0.1385711, %v2340
        %v2342 = vrcp.pop %v2339
        %v2343 = vmul.f32 -0.1385711, %v2342
        %v2344 = vadd.f32 %v2336, %v2341
        %v2345 = vadd.f32 %v2337, %v2343
        %v2346 = vadd.f32 %v2296, 7.0
        %v2347 = vadd.f32 %v2297, 7.0
        %v2348 = vrcp.pop %v2346
        %v2349 = vmul.f32 9.984369e-06, %v2348
        %v2350 = vrcp.pop %v2347
        %v2351 = vmul.f32 9.984369e-06, %v2350
        %v2352 = vadd.f32 %v2344, %v2349
        %v2353 = vadd.f32 %v2345, %v2351
        %v2354 = vadd.f32 %v2296, 8.0
        %v2355 = vadd.f32 %v2297, 8.0
        %v2356 = vrcp.pop %v2354
        %v2357 = vmul.f32 1.5056327e-07, %v2356
        %v2358 = vrcp.pop %v2355
        %v2359 = vmul.f32 1.5056327e-07, %v2358
        %v2360 = vadd.f32 %v2352, %v2357
        %v2361 = vadd.f32 %v2353, %v2359
        %v2362 = vadd.f32 %v2294, 7.0
        %v2363 = vadd.f32 %v2295, 7.0
        %v2364 = vsub.f32 %v2362, 0.5
        %v2365 = vsub.f32 %v2363, 0.5
        %v2366 = vsub.f32 %v2294, 0.5
        %v2367 = vsub.f32 %v2295, 0.5
        %v2368 = vlog2.pop %v2364
        %v2369 = vmul.f32 %v2368, 0.6931472
        %v2370 = vlog2.pop %v2365
        %v2371 = vmul.f32 %v2370, 0.6931472
        %v2372 = vmul.f32 %v2366, %v2369
        %v2373 = vmul.f32 %v2367, %v2371
        %v2374 = vadd.f32 %v2372, 0.9189385
        %v2375 = vadd.f32 %v2373, 0.9189385
        %v2376 = vsub.f32 %v2374, %v2364
        %v2377 = vsub.f32 %v2375, %v2365
        %v2378 = vlog2.pop %v2360
        %v2379 = vmul.f32 %v2378, 0.6931472
        %v2380 = vlog2.pop %v2361
        %v2381 = vmul.f32 %v2380, 0.6931472
        %v2382 = vadd.f32 %v2376, %v2379
        %v2383 = vadd.f32 %v2377, %v2381
        %v2384 = vstv %s234
        %v2385 = vsub.f32 %v2382, %v2384
        %v2386 = vsub.f32 %v2383, %v2384
        %v2387 = vsel %vm2292, %v2385, 0.0
        %v2388 = vsel %vm2293, %v2386, 0.0
        %v2405 = vcombine.low %v2276, %v2277
        %v2406 = vcombine.low %v2278, %v2279
        %v2407 = vcombine.low %v2280, %v2281
        %v2408 = vcombine.low %v2282, %v2283
        %v2410 = vunpack.c.l.s4 1966171168
        %v2411 = vunpack.c.0.s8 %v2410
        %v2412 = vlaneseq
        %v2413 = vshrl.u32 %v2412, 7
        %v2414 = vsub.s32 %v2411, %v2413
        %v2415 = vrot.slane %v2405, %v2414
        %v2417 = vunpack.c.l.s4 1966171168
        %v2418 = vunpack.c.0.s8 %v2417
        %v2419 = vlaneseq
        %v2420 = vshrl.u32 %v2419, 7
        %v2421 = vsub.s32 %v2418, %v2420
        %v2422 = vrot.slane %v2406, %v2421
        %v2424 = vunpack.c.l.s4 1966171168
        %v2425 = vunpack.c.0.s8 %v2424
        %v2426 = vlaneseq
        %v2427 = vshrl.u32 %v2426, 7
        %v2428 = vsub.s32 %v2425, %v2427
        %v2429 = vrot.slane %v2407, %v2428
        %v2431 = vunpack.c.l.s4 1966171168
        %v2432 = vunpack.c.0.s8 %v2431
        %v2433 = vlaneseq
        %v2434 = vshrl.u32 %v2433, 7
        %v2435 = vsub.s32 %v2432, %v2434
        %v2436 = vrot.slane %v2408, %v2435
        %v2437 = vcombine.low %v2415, %v2422
        %v2438 = vcombine.low %v2429, %v2436
        %v2440 = vunpack.c.l.s4 1966171168
        %v2441 = vunpack.c.0.s8 %v2440
        %v2442 = vlaneseq
        %v2443 = vshrl.u32 %v2442, 7
        %v2444 = vsub.s32 %v2441, %v2443
        %v2445 = vrot.slane %v2437, %v2444
        %v2447 = vunpack.c.l.s4 1966171168
        %v2448 = vunpack.c.0.s8 %v2447
        %v2449 = vlaneseq
        %v2450 = vshrl.u32 %v2449, 7
        %v2451 = vsub.s32 %v2448, %v2450
        %v2452 = vrot.slane %v2438, %v2451
        %v2453 = vcombine.low %v2445, %v2452
        %v2454 = vcombine.low %v2284, %v2285
        %v2455 = vcombine.low %v2286, %v2287
        %v2456 = vcombine.low %v2288, %v2289
        %v2457 = vcombine.low %v2290, %v2291
        %v2459 = vunpack.c.l.s4 1966171168
        %v2460 = vunpack.c.0.s8 %v2459
        %v2461 = vlaneseq
        %v2462 = vshrl.u32 %v2461, 7
        %v2463 = vsub.s32 %v2460, %v2462
        %v2464 = vrot.slane %v2454, %v2463
        %v2466 = vunpack.c.l.s4 1966171168
        %v2467 = vunpack.c.0.s8 %v2466
        %v2468 = vlaneseq
        %v2469 = vshrl.u32 %v2468, 7
        %v2470 = vsub.s32 %v2467, %v2469
        %v2471 = vrot.slane %v2455, %v2470
        %v2473 = vunpack.c.l.s4 1966171168
        %v2474 = vunpack.c.0.s8 %v2473
        %v2475 = vlaneseq
        %v2476 = vshrl.u32 %v2475, 7
        %v2477 = vsub.s32 %v2474, %v2476
        %v2478 = vrot.slane %v2456, %v2477
        %v2480 = vunpack.c.l.s4 1966171168
        %v2481 = vunpack.c.0.s8 %v2480
        %v2482 = vlaneseq
        %v2483 = vshrl.u32 %v2482, 7
        %v2484 = vsub.s32 %v2481, %v2483
        %v2485 = vrot.slane %v2457, %v2484
        %v2486 = vcombine.low %v2464, %v2471
        %v2487 = vcombine.low %v2478, %v2485
        %v2489 = vunpack.c.l.s4 1966171168
        %v2490 = vunpack.c.0.s8 %v2489
        %v2491 = vlaneseq
        %v2492 = vshrl.u32 %v2491, 7
        %v2493 = vsub.s32 %v2490, %v2492
        %v2494 = vrot.slane %v2486, %v2493
        %v2496 = vunpack.c.l.s4 1966171168
        %v2497 = vunpack.c.0.s8 %v2496
        %v2498 = vlaneseq
        %v2499 = vshrl.u32 %v2498, 7
        %v2500 = vsub.s32 %v2497, %v2499
        %v2501 = vrot.slane %v2487, %v2500
        %v2502 = vcombine.low %v2494, %v2501
        %v2505 = vadd.f32 %v2387, %v2453
        %v2506 = vadd.f32 %v2388, %v2502
        %2507 = vst [vmem:[%s230] sm:$0xff] %v2505
        %2508 = vst [vmem:[%s230 + $0x8] sm:$0xff] %v2506
        %s2509 = smul.u32 16, %s16
        %p2510 = scmp.lt.s32.totalorder %s2509, 63
        %s2511 = scalar_select %p2510, %s2509, 63
        %s2512 = scalar_lea.vmem %s4, %s2511
        // Predicated region
        $region41: #{glmnb_forward.1} parent=35 // pred_check
          %p2513 = pneg %p128
        $region42: #{glmnb_forward.1} parent=35 // pred_check_branch
          %2515 = sbr.rel (%p2513) target = $region44
        $region43: #{glmnb_forward.1} parent=35 // pred_region
          %s2516 = smul.u32 16, %s16
        $region44: #{glmnb_forward.1} parent=35 // pred_fallthru
          _
      $region36: #{glmnb_forward.1} parent=5 // pred_fallthru
        _
      %p2517 = scmp.le.s32.totalorder 2, %s11
      // Predicated region
      $region45: #{glmnb_forward.1} parent=5 // pred_check
        %p2518 = pneg %p2517
      $region46: #{glmnb_forward.1} parent=5 // pred_check_branch
        %2520 = sbr.rel (%p2518) target = $region48
      $region47: #{glmnb_forward.1} parent=5 // pred_region
        %s2521 = ssub.s32 %s11, 2
        // Predicated region
        $region49: #{glmnb_forward.1} parent=47 // pred_check
          %p2522 = pneg %p134
        $region50: #{glmnb_forward.1} parent=47 // pred_check_branch
          %2524 = sbr.rel (%p2522) target = $region52
        $region51: #{glmnb_forward.1} parent=47 // pred_region
          %s2525 = smul.u32 16, %s17
          %p2526 = scmp.lt.s32.totalorder %s2525, 63
          %s2527 = scalar_select %p2526, %s2525, 63
          %s2528 = scalar_lea.vmem %s4, %s2527
        $region52: #{glmnb_forward.1} parent=47 // pred_fallthru
          _
      $region48: #{glmnb_forward.1} parent=5 // pred_fallthru
        _
    $region6: #{glmnb_forward.1} parent=1 // loop_footer
      %s15 = sadd.s32 1, %s11
    $region7: #{glmnb_forward.1} parent=1 // loop_footer_branch
      %10 = sbr.rel target = $region3
    $region8: #{glmnb_forward.1} parent=1 // loop_exit
      _
    %2529 = vsyncpa [#allocation3], 1
    %s2530 = scalar_lea.sflag [#allocation3], 1
    %2531 = vsyncpa %s2530, 1

</llo_original>
